<compile_context>
chip_gen: v7x
topology: tpu7x:2x2x1
jax: 0.10.0
libtpu: 0.0.40
codegen_flags: <defaults>
</compile_context>

<pallas_src>
import jax
import jax.numpy as jnp
from jax.experimental import pallas as pl
from jax.experimental.pallas import tpu as pltpu


def decoder_kernel(enc_ref, y_ref, wbf_ref, wrow_ref, scal_ref, out_ref):
    B, T, M = enc_ref.shape
    GM = wbf_ref.shape[1]            # 4P + M
    P = (GM - M) // 4
    G = 4 * P

    # ---- loop-invariant prep (hoisted out of the serial time loop) ----------
    slab = wbf_ref[...]                               # (2P+M, 4P+M) bf16
    w_step = slab[0:2 * P, :]                         # (2P,4P+M): [[whh|w1h],[0|w1c]]
    w_enc = slab[2 * P:2 * P + M, :]                  # (M,4P+M): [w1e|wfc_ctx|wff_c|w2|0..]
    w2col = w_enc[:, M + 2:M + 3]                     # (M,1) attn2 weight column

    rows = wrow_ref[...]                              # (8, 4P+M) f32
    b1 = rows[0:1, 0:M]                               # (1,M)
    wih = rows[1:2, 0:G]                              # (1,4P)  gate order i,f,g,o
    blstm = rows[2:3, 0:G]                            # (1,4P)  b_ih + b_hh
    wffh = rows[3:4, 0:P]                             # (1,P)

    # One hoisted bf16 MXU push gives the w1e projection (b1 folded) AND the
    # per-(b,t) scalars q1 = enc.wfc_ctx, q2 = enc.wff_c, so the per-step
    # (B,M) context vector is never built.
    enc_bf = enc_ref[...].reshape(B * T, M).astype(jnp.bfloat16)
    proj_all = jnp.dot(enc_bf, w_enc, preferred_element_type=jnp.float32)
    enc_proj = proj_all[:, 0:M].reshape(B, T, M) + b1[None]        # (B,T,M)
    q1 = proj_all[:, M:M + 1].reshape(B, T, 1)
    q2 = proj_all[:, M + 1:M + 2].reshape(B, T, 1)
    qstack = jnp.concatenate(
        [q1, q2, jnp.ones((B, T, 1), jnp.float32)], axis=2)        # (B,T,3)

    # fc()'s y contribution, pre-scaled once: y*wfc_y + bfc (SMEM scalars).
    y_scaled = y_ref[...] * scal_ref[0] + scal_ref[1]              # (B,T)

    hidden = jnp.zeros((B, P), jnp.float32)
    cell = jnp.zeros((B, P), jnp.float32)
    ctx_ff = jnp.zeros((B, 1), jnp.float32)

    # T is small and static: fully unroll so the LLO scheduler can overlap the
    # MXU push of step t+1 with the EUP (tanh/sigmoid) tail of step t.
    for t in range(T):
        # -- ONE fused MXU push: LSTM-gate hh terms + attention query ---------
        state_bf = jnp.concatenate([hidden, cell], axis=1).astype(jnp.bfloat16)
        proj = jnp.dot(state_bf, w_step, preferred_element_type=jnp.float32)
        gate_hh = proj[:, 0:G]           # hidden @ whh  (i,f,g,o blocks)
        query = proj[:, G:G + M]         # hidden@w1h + cell@w1c

        # -- attention (attn2 bias b2 dropped: cancels under softmax) ---------
        z = jnp.tanh(query[:, None, :] + enc_proj)                 # (B,T,M)
        e = jnp.dot(z.reshape(B * T, M).astype(jnp.bfloat16), w2col,
                    preferred_element_type=jnp.float32).reshape(B, T, 1)
        # no max-shift: z is tanh-bounded so |e| <= ||w2||_1 << 88 (f32 exp)
        pexp = jnp.exp(e)                                          # (B,T,1)
        red = jnp.sum(pexp * qstack, axis=1)                       # (B,3)
        inv_den = pl.reciprocal(red[:, 2:3], approx=True)          # (B,1)
        ctx_fc = red[:, 0:1] * inv_den        # = context . wfc_ctx
        ctx_ff = red[:, 1:2] * inv_den        # = context . wff_c

        # -- y_tilde = fc(cat(context, y_history[:, t:t+1])) ------------------
        y_tilde = ctx_fc + y_scaled[:, t:t + 1]                    # (B,1)

        # -- LSTM cell step (hh term already computed by the fused push) ------
        pre = y_tilde * wih + gate_hh + blstm                      # (B,4P)
        i_g = jax.nn.sigmoid(pre[:, 0 * P:1 * P])
        f_g = jax.nn.sigmoid(pre[:, 1 * P:2 * P])
        g_g = jnp.tanh(pre[:, 2 * P:3 * P])
        o_g = jax.nn.sigmoid(pre[:, 3 * P:4 * P])
        cell = f_g * cell + i_g * g_g
        hidden = o_g * jnp.tanh(cell)

    # ---- fc_final(cat(hidden, context)) -- context never materialized -------
    out_ref[...] = (jnp.sum(hidden * wffh, axis=1, keepdims=True)
                    + ctx_ff + scal_ref[2])


def decoder_forward(enc, y_hist, p):
    B, T, M = enc.shape
    P = p["whh"].shape[1]
    G = 4 * P

    # ---- pure layout plumbing: pack all weights into 2 slabs + 3 scalars ----
    # Fused per-step weight (2P, 4P+M): [[whh_f | w1h], [0 | w1c]]
    whh_f = jnp.transpose(p["whh"], (1, 0, 2)).reshape(P, G)          # (P,4P)
    w_step = jnp.concatenate(
        [jnp.concatenate([whh_f, p["w1h"]], axis=1),
         jnp.concatenate([jnp.zeros((P, G), jnp.float32), p["w1c"]], axis=1)],
        axis=0)                                                       # (2P,4P+M)
    # Hoisted encoder-projection weight block (M, 4P+M):
    #   cols [0:M]=w1e, [M]=wfc_ctx^T, [M+1]=wff_c^T, [M+2]=w2^T, rest 0.
    w_enc = jnp.zeros((M, G + M), jnp.float32)
    w_enc = w_enc.at[:, 0:M].set(p["w1e"])
    w_enc = w_enc.at[:, M].set(p["wfc_ctx"][0])
    w_enc = w_enc.at[:, M + 1].set(p["wff_c"][0])
    w_enc = w_enc.at[:, M + 2].set(p["w2"][0])
    slab_bf = jnp.concatenate([w_step, w_enc], axis=0).astype(jnp.bfloat16)

    # f32 row-vector slab (8, 4P+M): b1, wih, blstm, wff_h (rows 4..7 padding).
    rows = jnp.zeros((8, G + M), jnp.float32)
    rows = rows.at[0, 0:M].set(p["b1"][0])
    rows = rows.at[1, 0:G].set(p["wih"].reshape(G))
    rows = rows.at[2, 0:G].set(p["blstm"].reshape(G))
    rows = rows.at[3, 0:P].set(p["wff_h"][0])

    # SMEM scalars: [wfc_y, bfc, bff]
    scal = jnp.stack([p["wfc_y"][0, 0], p["bfc"][0, 0], p["bff"][0, 0]])

    inputs = [enc, y_hist, slab_bf, rows, scal]

    def vmem_spec(x):
        nd = x.ndim
        return pl.BlockSpec(x.shape, lambda i, _nd=nd: (0,) * _nd)

    in_specs = [vmem_spec(enc), vmem_spec(y_hist), vmem_spec(slab_bf),
                vmem_spec(rows),
                pl.BlockSpec(memory_space=pltpu.MemorySpace.SMEM)]

    return pl.pallas_call(
        decoder_kernel,
        out_shape=jax.ShapeDtypeStruct((B, 1), jnp.float32),
        grid=(1,),
        in_specs=in_specs,
        out_specs=pl.BlockSpec((B, 1), lambda i: (0, 0)),
        compiler_params=pltpu.CompilerParams(
            dimension_semantics=("arbitrary",)),
    )(*inputs)


def decoder_reference(enc, y_hist, p):
    """Pure-JAX reference mirroring the PyTorch forward pass."""
    B, T, M = enc.shape
    P = p["whh"].shape[1]
    hp = jax.lax.Precision.HIGHEST
    hidden = jnp.zeros((B, P), jnp.float32)
    cell = jnp.zeros((B, P), jnp.float32)
    context = jnp.zeros((B, M), jnp.float32)
    enc_proj = jnp.einsum("btm,mn->btn", enc, p["w1e"], precision=hp)
    for t in range(T):
        hc = hidden @ p["w1h"] + cell @ p["w1c"]
        z = jnp.tanh(hc[:, None, :] + enc_proj + p["b1"][None])
        e = jnp.sum(z * p["w2"][None], axis=2) + p["b2"][0, 0]
        a = jax.nn.softmax(e, axis=1)
        context = jnp.einsum("bt,btm->bm", a, enc, precision=hp)
        y_t = y_hist[:, t:t + 1]
        y_tilde = (jnp.sum(context * p["wfc_ctx"], axis=1, keepdims=True)
                   + y_t * p["wfc_y"][0, 0] + p["bfc"][0, 0])
        gates = [y_tilde * p["wih"][g:g + 1] + hidden @ p["whh"][g]
                 + p["blstm"][g:g + 1] for g in range(4)]
        i_g = jax.nn.sigmoid(gates[0])
        f_g = jax.nn.sigmoid(gates[1])
        g_g = jnp.tanh(gates[2])
        o_g = jax.nn.sigmoid(gates[3])
        cell = f_g * cell + i_g * g_g
        hidden = o_g * jnp.tanh(cell)
    return (jnp.sum(hidden * p["wff_h"], axis=1, keepdims=True)
            + jnp.sum(context * p["wff_c"], axis=1, keepdims=True)
            + p["bff"][0, 0])


if __name__ == "__main__":
    # batch=2, T=8, encoder_hidden=32, decoder_hidden=32, out_feats=1
    B, T, M, P = 2, 8, 32, 32
    key = jax.random.PRNGKey(0)
    ks = jax.random.split(key, 16)

    def nrm(k, shape, scale):
        return (scale * jax.random.normal(k, shape)).astype(jnp.float32)

    params = dict(
        w1h=nrm(ks[0], (P, M), 0.1),
        w1c=nrm(ks[1], (P, M), 0.1),
        w1e=nrm(ks[2], (M, M), 0.1),
        b1=nrm(ks[3], (1, M), 0.1),
        w2=nrm(ks[4], (1, M), 0.1),
        b2=nrm(ks[5], (1, 1), 0.1),
        wih=nrm(ks[6], (4, P), 0.1),
        whh=nrm(ks[7], (4, P, P), 0.1),
        blstm=nrm(ks[8], (4, P), 0.1),
        wfc_ctx=nrm(ks[9], (1, M), 1.0),   # mirrors fc.weight.data.normal_()
        wfc_y=nrm(ks[10], (1, 1), 1.0),
        bfc=nrm(ks[11], (1, 1), 0.1),
        wff_h=nrm(ks[12], (1, P), 0.1),
        wff_c=nrm(ks[13], (1, M), 0.1),
        bff=nrm(ks[14], (1, 1), 0.1),
    )
    input_encoded = jax.random.normal(ks[15], (B, T, M), dtype=jnp.float32)
    y_history = jax.random.normal(jax.random.PRNGKey(1), (B, T), dtype=jnp.float32)

    # Guard for the in-kernel softmax without max-shift: z is tanh-bounded, so
    # |e| <= ||w2||_1, which must stay far below the f32 exp overflow (~88).
    assert float(jnp.sum(jnp.abs(params["w2"]))) < 80.0

    out = decoder_forward(input_encoded, y_history, params)
    out = jax.block_until_ready(out)

    ref = decoder_reference(input_encoded, y_history, params)
    assert out.shape == (B, 1)
    assert bool(jnp.all(jnp.isfinite(out)))
    # bf16 MXU operands + approx reciprocal: error budget ~1e-2 abs worst case.
    assert bool(jnp.allclose(out, ref, rtol=2e-2, atol=3e-2)), (out, ref)
    print("KERNEL_OK")
</pallas_src>

<mosaic_0001>
module attributes {stable_mosaic.version = 11 : i64} {
  func.func @decoder_kernel(%arg0: i32, %arg1: memref<2x8x32xf32, #tpu.memory_space<vmem>>, %arg2: memref<2x8xf32, #tpu.memory_space<vmem>>, %arg3: memref<96x160xbf16, #tpu.memory_space<vmem>>, %arg4: memref<8x160xf32, #tpu.memory_space<vmem>>, %arg5: memref<3xf32, #tpu.memory_space<smem>>, %arg6: memref<2x1xf32, #tpu.memory_space<vmem>>) attributes {dimension_semantics = [#tpu.dimension_semantics<arbitrary>], iteration_bounds = array<i64: 1>, scalar_prefetch = 0 : i64, scratch_operands = 0 : i64, tpu.core_type = #tpu.core_type<tc>, window_params = [{pipeline_mode = #tpu.pipeline_mode<synchronous>, transform_indices = @transform_0, window_bounds = array<i64: 2, 8, 32>}, {pipeline_mode = #tpu.pipeline_mode<synchronous>, transform_indices = @transform_1, window_bounds = array<i64: 2, 8>}, {pipeline_mode = #tpu.pipeline_mode<synchronous>, transform_indices = @transform_2, window_bounds = array<i64: 96, 160>}, {pipeline_mode = #tpu.pipeline_mode<synchronous>, transform_indices = @transform_3, window_bounds = array<i64: 8, 160>}, {transform_indices = @transform_4, window_bounds = array<i64: 3>}, {pipeline_mode = #tpu.pipeline_mode<synchronous>, transform_indices = @transform_5, window_bounds = array<i64: 2, 1>}]} {
    %c0 = arith.constant 0 : index
    %c0_0 = arith.constant 0 : index
    %0 = vector.load %arg3[%c0, %c0_0] : memref<96x160xbf16, #tpu.memory_space<vmem>>, vector<96x160xbf16>
    %1 = vector.extract_strided_slice %0 {offsets = [0, 0], sizes = [64, 160], strides = [1, 1]} : vector<96x160xbf16> to vector<64x160xbf16>
    %2 = vector.extract_strided_slice %0 {offsets = [64, 0], sizes = [32, 160], strides = [1, 1]} : vector<96x160xbf16> to vector<32x160xbf16>
    %3 = vector.extract_strided_slice %2 {offsets = [0, 34], sizes = [32, 1], strides = [1, 1]} : vector<32x160xbf16> to vector<32x1xbf16>
    %c0_1 = arith.constant 0 : index
    %c0_2 = arith.constant 0 : index
    %4 = vector.load %arg4[%c0_1, %c0_2] : memref<8x160xf32, #tpu.memory_space<vmem>>, vector<8x160xf32>
    %5 = vector.extract_strided_slice %4 {offsets = [0, 0], sizes = [1, 32], strides = [1, 1]} : vector<8x160xf32> to vector<1x32xf32>
    %6 = vector.extract_strided_slice %4 {offsets = [1, 0], sizes = [1, 128], strides = [1, 1]} : vector<8x160xf32> to vector<1x128xf32>
    %7 = vector.extract_strided_slice %4 {offsets = [2, 0], sizes = [1, 128], strides = [1, 1]} : vector<8x160xf32> to vector<1x128xf32>
    %8 = vector.extract_strided_slice %4 {offsets = [3, 0], sizes = [1, 32], strides = [1, 1]} : vector<8x160xf32> to vector<1x32xf32>
    %c0_3 = arith.constant 0 : index
    %c0_4 = arith.constant 0 : index
    %c0_5 = arith.constant 0 : index
    %9 = vector.load %arg1[%c0_3, %c0_4, %c0_5] : memref<2x8x32xf32, #tpu.memory_space<vmem>>, vector<2x8x32xf32>
    %10 = vector.shape_cast %9 : vector<2x8x32xf32> to vector<16x32xf32>
    %11 = arith.truncf %10 : vector<16x32xf32> to vector<16x32xbf16>
    %cst = arith.constant dense<0.000000e+00> : vector<16x160xf32>
    %12 = tpu.matmul %11, %2, %cst {dimension_numbers = #tpu.dot_dimension_numbers<[1], [0], [0], [1], [0, 0, 1, 1], [], []>} : vector<16x32xbf16>, vector<32x160xbf16>, vector<16x160xf32> -> vector<16x160xf32>
    %13 = vector.extract_strided_slice %12 {offsets = [0, 0], sizes = [16, 32], strides = [1, 1]} : vector<16x160xf32> to vector<16x32xf32>
    %14 = vector.shape_cast %13 : vector<16x32xf32> to vector<2x8x32xf32>
    %15 = vector.shape_cast %5 : vector<1x32xf32> to vector<1x1x32xf32>
    %16 = vector.broadcast %15 : vector<1x1x32xf32> to vector<2x8x32xf32>
    %17 = arith.addf %14, %16 : vector<2x8x32xf32>
    %18 = vector.extract_strided_slice %12 {offsets = [0, 32], sizes = [16, 1], strides = [1, 1]} : vector<16x160xf32> to vector<16x1xf32>
    %19 = vector.shape_cast %18 : vector<16x1xf32> to vector<2x8x1xf32>
    %20 = vector.extract_strided_slice %12 {offsets = [0, 33], sizes = [16, 1], strides = [1, 1]} : vector<16x160xf32> to vector<16x1xf32>
    %21 = vector.shape_cast %20 : vector<16x1xf32> to vector<2x8x1xf32>
    %cst_6 = arith.constant 1.000000e+00 : f32
    %22 = vector.broadcast %cst_6 : f32 to vector<2x8x1xf32>
    %23 = tpu.concatenate %19, %21, %22 in 2 : vector<2x8x1xf32>, vector<2x8x1xf32>, vector<2x8x1xf32> -> vector<2x8x3xf32>
    %c0_7 = arith.constant 0 : index
    %c0_8 = arith.constant 0 : index
    %24 = vector.load %arg2[%c0_7, %c0_8] : memref<2x8xf32, #tpu.memory_space<vmem>>, vector<2x8xf32>
    %c0_9 = arith.constant 0 : index
    %25 = memref.load %arg5[%c0_9] : memref<3xf32, #tpu.memory_space<smem>>
    %26 = vector.broadcast %25 : f32 to vector<2x8xf32>
    %27 = arith.mulf %24, %26 : vector<2x8xf32>
    %c1 = arith.constant 1 : index
    %28 = memref.load %arg5[%c1] : memref<3xf32, #tpu.memory_space<smem>>
    %29 = vector.broadcast %28 : f32 to vector<2x8xf32>
    %30 = arith.addf %27, %29 : vector<2x8xf32>
    %cst_10 = arith.constant 0.000000e+00 : f32
    %31 = vector.broadcast %cst_10 : f32 to vector<2x32xf32>
    %cst_11 = arith.constant 0.000000e+00 : f32
    %32 = vector.broadcast %cst_11 : f32 to vector<2x32xf32>
    %33 = tpu.concatenate %31, %32 in 1 : vector<2x32xf32>, vector<2x32xf32> -> vector<2x64xf32>
    %34 = arith.truncf %33 : vector<2x64xf32> to vector<2x64xbf16>
    %cst_12 = arith.constant dense<0.000000e+00> : vector<2x160xf32>
    %35 = tpu.matmul %34, %1, %cst_12 {dimension_numbers = #tpu.dot_dimension_numbers<[1], [0], [0], [1], [0, 0, 1, 1], [], []>} : vector<2x64xbf16>, vector<64x160xbf16>, vector<2x160xf32> -> vector<2x160xf32>
    %36 = vector.extract_strided_slice %35 {offsets = [0, 0], sizes = [2, 128], strides = [1, 1]} : vector<2x160xf32> to vector<2x128xf32>
    %37 = vector.extract_strided_slice %35 {offsets = [0, 128], sizes = [2, 32], strides = [1, 1]} : vector<2x160xf32> to vector<2x32xf32>
    %38 = vector.shape_cast %37 : vector<2x32xf32> to vector<2x1x32xf32>
    %39 = vector.broadcast %38 : vector<2x1x32xf32> to vector<2x8x32xf32>
    %40 = arith.addf %39, %17 : vector<2x8x32xf32>
    %41 = math.tanh %40 : vector<2x8x32xf32>
    %42 = vector.shape_cast %41 : vector<2x8x32xf32> to vector<16x32xf32>
    %43 = arith.truncf %42 : vector<16x32xf32> to vector<16x32xbf16>
    %cst_13 = arith.constant dense<0.000000e+00> : vector<16x1xf32>
    %44 = tpu.matmul %43, %3, %cst_13 {dimension_numbers = #tpu.dot_dimension_numbers<[1], [0], [0], [1], [0, 0, 1, 1], [], []>} : vector<16x32xbf16>, vector<32x1xbf16>, vector<16x1xf32> -> vector<16x1xf32>
    %45 = vector.shape_cast %44 : vector<16x1xf32> to vector<2x8x1xf32>
    %46 = math.exp %45 : vector<2x8x1xf32>
    %47 = vector.broadcast %46 : vector<2x8x1xf32> to vector<2x8x3xf32>
    %48 = arith.mulf %47, %23 : vector<2x8x3xf32>
    %cst_14 = arith.constant dense<0.000000e+00> : vector<2x3xf32>
    %49 = vector.multi_reduction <add>, %48, %cst_14 [1] : vector<2x8x3xf32> to vector<2x3xf32>
    %50 = vector.extract_strided_slice %49 {offsets = [0, 2], sizes = [2, 1], strides = [1, 1]} : vector<2x3xf32> to vector<2x1xf32>
    %51 = tpu.reciprocal %50 {approx = true} : vector<2x1xf32> -> vector<2x1xf32>
    %52 = vector.extract_strided_slice %49 {offsets = [0, 0], sizes = [2, 1], strides = [1, 1]} : vector<2x3xf32> to vector<2x1xf32>
    %53 = arith.mulf %52, %51 : vector<2x1xf32>
    %54 = vector.extract_strided_slice %30 {offsets = [0, 0], sizes = [2, 1], strides = [1, 1]} : vector<2x8xf32> to vector<2x1xf32>
    %55 = arith.addf %53, %54 : vector<2x1xf32>
    %56 = vector.broadcast %55 : vector<2x1xf32> to vector<2x128xf32>
    %57 = vector.broadcast %6 : vector<1x128xf32> to vector<2x128xf32>
    %58 = arith.mulf %56, %57 : vector<2x128xf32>
    %59 = arith.addf %58, %36 : vector<2x128xf32>
    %60 = vector.broadcast %7 : vector<1x128xf32> to vector<2x128xf32>
    %61 = arith.addf %59, %60 : vector<2x128xf32>
    %62 = vector.extract_strided_slice %61 {offsets = [0, 0], sizes = [2, 32], strides = [1, 1]} : vector<2x128xf32> to vector<2x32xf32>
    %63 = arith.negf %62 : vector<2x32xf32>
    %64 = math.exp %63 : vector<2x32xf32>
    %cst_15 = arith.constant 1.000000e+00 : f32
    %65 = vector.broadcast %cst_15 : f32 to vector<2x32xf32>
    %66 = arith.addf %65, %64 : vector<2x32xf32>
    %67 = arith.divf %65, %66 : vector<2x32xf32>
    %68 = vector.extract_strided_slice %61 {offsets = [0, 32], sizes = [2, 32], strides = [1, 1]} : vector<2x128xf32> to vector<2x32xf32>
    %69 = arith.negf %68 : vector<2x32xf32>
    %70 = math.exp %69 : vector<2x32xf32>
    %cst_16 = arith.constant 1.000000e+00 : f32
    %71 = vector.broadcast %cst_16 : f32 to vector<2x32xf32>
    %72 = arith.addf %71, %70 : vector<2x32xf32>
    %73 = arith.divf %71, %72 : vector<2x32xf32>
    %74 = vector.extract_strided_slice %61 {offsets = [0, 64], sizes = [2, 32], strides = [1, 1]} : vector<2x128xf32> to vector<2x32xf32>
    %75 = math.tanh %74 : vector<2x32xf32>
    %76 = vector.extract_strided_slice %61 {offsets = [0, 96], sizes = [2, 32], strides = [1, 1]} : vector<2x128xf32> to vector<2x32xf32>
    %77 = arith.negf %76 : vector<2x32xf32>
    %78 = math.exp %77 : vector<2x32xf32>
    %cst_17 = arith.constant 1.000000e+00 : f32
    %79 = vector.broadcast %cst_17 : f32 to vector<2x32xf32>
    %80 = arith.addf %79, %78 : vector<2x32xf32>
    %81 = arith.divf %79, %80 : vector<2x32xf32>
    %82 = arith.mulf %73, %32 : vector<2x32xf32>
    %83 = arith.mulf %67, %75 : vector<2x32xf32>
    %84 = arith.addf %82, %83 : vector<2x32xf32>
    %85 = math.tanh %84 : vector<2x32xf32>
    %86 = arith.mulf %81, %85 : vector<2x32xf32>
    %87 = tpu.concatenate %86, %84 in 1 : vector<2x32xf32>, vector<2x32xf32> -> vector<2x64xf32>
    %88 = arith.truncf %87 : vector<2x64xf32> to vector<2x64xbf16>
    %cst_18 = arith.constant dense<0.000000e+00> : vector<2x160xf32>
    %89 = tpu.matmul %88, %1, %cst_18 {dimension_numbers = #tpu.dot_dimension_numbers<[1], [0], [0], [1], [0, 0, 1, 1], [], []>} : vector<2x64xbf16>, vector<64x160xbf16>, vector<2x160xf32> -> vector<2x160xf32>
    %90 = vector.extract_strided_slice %89 {offsets = [0, 0], sizes = [2, 128], strides = [1, 1]} : vector<2x160xf32> to vector<2x128xf32>
    %91 = vector.extract_strided_slice %89 {offsets = [0, 128], sizes = [2, 32], strides = [1, 1]} : vector<2x160xf32> to vector<2x32xf32>
    %92 = vector.shape_cast %91 : vector<2x32xf32> to vector<2x1x32xf32>
    %93 = vector.broadcast %92 : vector<2x1x32xf32> to vector<2x8x32xf32>
    %94 = arith.addf %93, %17 : vector<2x8x32xf32>
    %95 = math.tanh %94 : vector<2x8x32xf32>
    %96 = vector.shape_cast %95 : vector<2x8x32xf32> to vector<16x32xf32>
    %97 = arith.truncf %96 : vector<16x32xf32> to vector<16x32xbf16>
    %cst_19 = arith.constant dense<0.000000e+00> : vector<16x1xf32>
    %98 = tpu.matmul %97, %3, %cst_19 {dimension_numbers = #tpu.dot_dimension_numbers<[1], [0], [0], [1], [0, 0, 1, 1], [], []>} : vector<16x32xbf16>, vector<32x1xbf16>, vector<16x1xf32> -> vector<16x1xf32>
    %99 = vector.shape_cast %98 : vector<16x1xf32> to vector<2x8x1xf32>
    %100 = math.exp %99 : vector<2x8x1xf32>
    %101 = vector.broadcast %100 : vector<2x8x1xf32> to vector<2x8x3xf32>
    %102 = arith.mulf %101, %23 : vector<2x8x3xf32>
    %cst_20 = arith.constant dense<0.000000e+00> : vector<2x3xf32>
    %103 = vector.multi_reduction <add>, %102, %cst_20 [1] : vector<2x8x3xf32> to vector<2x3xf32>
    %104 = vector.extract_strided_slice %103 {offsets = [0, 2], sizes = [2, 1], strides = [1, 1]} : vector<2x3xf32> to vector<2x1xf32>
    %105 = tpu.reciprocal %104 {approx = true} : vector<2x1xf32> -> vector<2x1xf32>
    %106 = vector.extract_strided_slice %103 {offsets = [0, 0], sizes = [2, 1], strides = [1, 1]} : vector<2x3xf32> to vector<2x1xf32>
    %107 = arith.mulf %106, %105 : vector<2x1xf32>
    %108 = vector.extract_strided_slice %30 {offsets = [0, 1], sizes = [2, 1], strides = [1, 1]} : vector<2x8xf32> to vector<2x1xf32>
    %109 = arith.addf %107, %108 : vector<2x1xf32>
    %110 = vector.broadcast %109 : vector<2x1xf32> to vector<2x128xf32>
    %111 = vector.broadcast %6 : vector<1x128xf32> to vector<2x128xf32>
    %112 = arith.mulf %110, %111 : vector<2x128xf32>
    %113 = arith.addf %112, %90 : vector<2x128xf32>
    %114 = vector.broadcast %7 : vector<1x128xf32> to vector<2x128xf32>
    %115 = arith.addf %113, %114 : vector<2x128xf32>
    %116 = vector.extract_strided_slice %115 {offsets = [0, 0], sizes = [2, 32], strides = [1, 1]} : vector<2x128xf32> to vector<2x32xf32>
    %117 = arith.negf %116 : vector<2x32xf32>
    %118 = math.exp %117 : vector<2x32xf32>
    %cst_21 = arith.constant 1.000000e+00 : f32
    %119 = vector.broadcast %cst_21 : f32 to vector<2x32xf32>
    %120 = arith.addf %119, %118 : vector<2x32xf32>
    %121 = arith.divf %119, %120 : vector<2x32xf32>
    %122 = vector.extract_strided_slice %115 {offsets = [0, 32], sizes = [2, 32], strides = [1, 1]} : vector<2x128xf32> to vector<2x32xf32>
    %123 = arith.negf %122 : vector<2x32xf32>
    %124 = math.exp %123 : vector<2x32xf32>
    %cst_22 = arith.constant 1.000000e+00 : f32
    %125 = vector.broadcast %cst_22 : f32 to vector<2x32xf32>
    %126 = arith.addf %125, %124 : vector<2x32xf32>
    %127 = arith.divf %125, %126 : vector<2x32xf32>
    %128 = vector.extract_strided_slice %115 {offsets = [0, 64], sizes = [2, 32], strides = [1, 1]} : vector<2x128xf32> to vector<2x32xf32>
    %129 = math.tanh %128 : vector<2x32xf32>
    %130 = vector.extract_strided_slice %115 {offsets = [0, 96], sizes = [2, 32], strides = [1, 1]} : vector<2x128xf32> to vector<2x32xf32>
    %131 = arith.negf %130 : vector<2x32xf32>
    %132 = math.exp %131 : vector<2x32xf32>
    %cst_23 = arith.constant 1.000000e+00 : f32
    %133 = vector.broadcast %cst_23 : f32 to vector<2x32xf32>
    %134 = arith.addf %133, %132 : vector<2x32xf32>
    %135 = arith.divf %133, %134 : vector<2x32xf32>
    %136 = arith.mulf %127, %84 : vector<2x32xf32>
    %137 = arith.mulf %121, %129 : vector<2x32xf32>
    %138 = arith.addf %136, %137 : vector<2x32xf32>
    %139 = math.tanh %138 : vector<2x32xf32>
    %140 = arith.mulf %135, %139 : vector<2x32xf32>
    %141 = tpu.concatenate %140, %138 in 1 : vector<2x32xf32>, vector<2x32xf32> -> vector<2x64xf32>
    %142 = arith.truncf %141 : vector<2x64xf32> to vector<2x64xbf16>
    %cst_24 = arith.constant dense<0.000000e+00> : vector<2x160xf32>
    %143 = tpu.matmul %142, %1, %cst_24 {dimension_numbers = #tpu.dot_dimension_numbers<[1], [0], [0], [1], [0, 0, 1, 1], [], []>} : vector<2x64xbf16>, vector<64x160xbf16>, vector<2x160xf32> -> vector<2x160xf32>
    %144 = vector.extract_strided_slice %143 {offsets = [0, 0], sizes = [2, 128], strides = [1, 1]} : vector<2x160xf32> to vector<2x128xf32>
    %145 = vector.extract_strided_slice %143 {offsets = [0, 128], sizes = [2, 32], strides = [1, 1]} : vector<2x160xf32> to vector<2x32xf32>
    %146 = vector.shape_cast %145 : vector<2x32xf32> to vector<2x1x32xf32>
    %147 = vector.broadcast %146 : vector<2x1x32xf32> to vector<2x8x32xf32>
    %148 = arith.addf %147, %17 : vector<2x8x32xf32>
    %149 = math.tanh %148 : vector<2x8x32xf32>
    %150 = vector.shape_cast %149 : vector<2x8x32xf32> to vector<16x32xf32>
    %151 = arith.truncf %150 : vector<16x32xf32> to vector<16x32xbf16>
    %cst_25 = arith.constant dense<0.000000e+00> : vector<16x1xf32>
    %152 = tpu.matmul %151, %3, %cst_25 {dimension_numbers = #tpu.dot_dimension_numbers<[1], [0], [0], [1], [0, 0, 1, 1], [], []>} : vector<16x32xbf16>, vector<32x1xbf16>, vector<16x1xf32> -> vector<16x1xf32>
    %153 = vector.shape_cast %152 : vector<16x1xf32> to vector<2x8x1xf32>
    %154 = math.exp %153 : vector<2x8x1xf32>
    %155 = vector.broadcast %154 : vector<2x8x1xf32> to vector<2x8x3xf32>
    %156 = arith.mulf %155, %23 : vector<2x8x3xf32>
    %cst_26 = arith.constant dense<0.000000e+00> : vector<2x3xf32>
    %157 = vector.multi_reduction <add>, %156, %cst_26 [1] : vector<2x8x3xf32> to vector<2x3xf32>
    %158 = vector.extract_strided_slice %157 {offsets = [0, 2], sizes = [2, 1], strides = [1, 1]} : vector<2x3xf32> to vector<2x1xf32>
    %159 = tpu.reciprocal %158 {approx = true} : vector<2x1xf32> -> vector<2x1xf32>
    %160 = vector.extract_strided_slice %157 {offsets = [0, 0], sizes = [2, 1], strides = [1, 1]} : vector<2x3xf32> to vector<2x1xf32>
    %161 = arith.mulf %160, %159 : vector<2x1xf32>
    %162 = vector.extract_strided_slice %30 {offsets = [0, 2], sizes = [2, 1], strides = [1, 1]} : vector<2x8xf32> to vector<2x1xf32>
    %163 = arith.addf %161, %162 : vector<2x1xf32>
    %164 = vector.broadcast %163 : vector<2x1xf32> to vector<2x128xf32>
    %165 = vector.broadcast %6 : vector<1x128xf32> to vector<2x128xf32>
    %166 = arith.mulf %164, %165 : vector<2x128xf32>
    %167 = arith.addf %166, %144 : vector<2x128xf32>
    %168 = vector.broadcast %7 : vector<1x128xf32> to vector<2x128xf32>
    %169 = arith.addf %167, %168 : vector<2x128xf32>
    %170 = vector.extract_strided_slice %169 {offsets = [0, 0], sizes = [2, 32], strides = [1, 1]} : vector<2x128xf32> to vector<2x32xf32>
    %171 = arith.negf %170 : vector<2x32xf32>
    %172 = math.exp %171 : vector<2x32xf32>
    %cst_27 = arith.constant 1.000000e+00 : f32
    %173 = vector.broadcast %cst_27 : f32 to vector<2x32xf32>
    %174 = arith.addf %173, %172 : vector<2x32xf32>
    %175 = arith.divf %173, %174 : vector<2x32xf32>
    %176 = vector.extract_strided_slice %169 {offsets = [0, 32], sizes = [2, 32], strides = [1, 1]} : vector<2x128xf32> to vector<2x32xf32>
    %177 = arith.negf %176 : vector<2x32xf32>
    %178 = math.exp %177 : vector<2x32xf32>
    %cst_28 = arith.constant 1.000000e+00 : f32
    %179 = vector.broadcast %cst_28 : f32 to vector<2x32xf32>
    %180 = arith.addf %179, %178 : vector<2x32xf32>
    %181 = arith.divf %179, %180 : vector<2x32xf32>
    %182 = vector.extract_strided_slice %169 {offsets = [0, 64], sizes = [2, 32], strides = [1, 1]} : vector<2x128xf32> to vector<2x32xf32>
    %183 = math.tanh %182 : vector<2x32xf32>
    %184 = vector.extract_strided_slice %169 {offsets = [0, 96], sizes = [2, 32], strides = [1, 1]} : vector<2x128xf32> to vector<2x32xf32>
    %185 = arith.negf %184 : vector<2x32xf32>
    %186 = math.exp %185 : vector<2x32xf32>
    %cst_29 = arith.constant 1.000000e+00 : f32
    %187 = vector.broadcast %cst_29 : f32 to vector<2x32xf32>
    %188 = arith.addf %187, %186 : vector<2x32xf32>
    %189 = arith.divf %187, %188 : vector<2x32xf32>
    %190 = arith.mulf %181, %138 : vector<2x32xf32>
    %191 = arith.mulf %175, %183 : vector<2x32xf32>
    %192 = arith.addf %190, %191 : vector<2x32xf32>
    %193 = math.tanh %192 : vector<2x32xf32>
    %194 = arith.mulf %189, %193 : vector<2x32xf32>
    %195 = tpu.concatenate %194, %192 in 1 : vector<2x32xf32>, vector<2x32xf32> -> vector<2x64xf32>
    %196 = arith.truncf %195 : vector<2x64xf32> to vector<2x64xbf16>
    %cst_30 = arith.constant dense<0.000000e+00> : vector<2x160xf32>
    %197 = tpu.matmul %196, %1, %cst_30 {dimension_numbers = #tpu.dot_dimension_numbers<[1], [0], [0], [1], [0, 0, 1, 1], [], []>} : vector<2x64xbf16>, vector<64x160xbf16>, vector<2x160xf32> -> vector<2x160xf32>
    %198 = vector.extract_strided_slice %197 {offsets = [0, 0], sizes = [2, 128], strides = [1, 1]} : vector<2x160xf32> to vector<2x128xf32>
    %199 = vector.extract_strided_slice %197 {offsets = [0, 128], sizes = [2, 32], strides = [1, 1]} : vector<2x160xf32> to vector<2x32xf32>
    %200 = vector.shape_cast %199 : vector<2x32xf32> to vector<2x1x32xf32>
    %201 = vector.broadcast %200 : vector<2x1x32xf32> to vector<2x8x32xf32>
    %202 = arith.addf %201, %17 : vector<2x8x32xf32>
    %203 = math.tanh %202 : vector<2x8x32xf32>
    %204 = vector.shape_cast %203 : vector<2x8x32xf32> to vector<16x32xf32>
    %205 = arith.truncf %204 : vector<16x32xf32> to vector<16x32xbf16>
    %cst_31 = arith.constant dense<0.000000e+00> : vector<16x1xf32>
    %206 = tpu.matmul %205, %3, %cst_31 {dimension_numbers = #tpu.dot_dimension_numbers<[1], [0], [0], [1], [0, 0, 1, 1], [], []>} : vector<16x32xbf16>, vector<32x1xbf16>, vector<16x1xf32> -> vector<16x1xf32>
    %207 = vector.shape_cast %206 : vector<16x1xf32> to vector<2x8x1xf32>
    %208 = math.exp %207 : vector<2x8x1xf32>
    %209 = vector.broadcast %208 : vector<2x8x1xf32> to vector<2x8x3xf32>
    %210 = arith.mulf %209, %23 : vector<2x8x3xf32>
    %cst_32 = arith.constant dense<0.000000e+00> : vector<2x3xf32>
    %211 = vector.multi_reduction <add>, %210, %cst_32 [1] : vector<2x8x3xf32> to vector<2x3xf32>
    %212 = vector.extract_strided_slice %211 {offsets = [0, 2], sizes = [2, 1], strides = [1, 1]} : vector<2x3xf32> to vector<2x1xf32>
    %213 = tpu.reciprocal %212 {approx = true} : vector<2x1xf32> -> vector<2x1xf32>
    %214 = vector.extract_strided_slice %211 {offsets = [0, 0], sizes = [2, 1], strides = [1, 1]} : vector<2x3xf32> to vector<2x1xf32>
    %215 = arith.mulf %214, %213 : vector<2x1xf32>
    %216 = vector.extract_strided_slice %30 {offsets = [0, 3], sizes = [2, 1], strides = [1, 1]} : vector<2x8xf32> to vector<2x1xf32>
    %217 = arith.addf %215, %216 : vector<2x1xf32>
    %218 = vector.broadcast %217 : vector<2x1xf32> to vector<2x128xf32>
    %219 = vector.broadcast %6 : vector<1x128xf32> to vector<2x128xf32>
    %220 = arith.mulf %218, %219 : vector<2x128xf32>
    %221 = arith.addf %220, %198 : vector<2x128xf32>
    %222 = vector.broadcast %7 : vector<1x128xf32> to vector<2x128xf32>
    %223 = arith.addf %221, %222 : vector<2x128xf32>
    %224 = vector.extract_strided_slice %223 {offsets = [0, 0], sizes = [2, 32], strides = [1, 1]} : vector<2x128xf32> to vector<2x32xf32>
    %225 = arith.negf %224 : vector<2x32xf32>
    %226 = math.exp %225 : vector<2x32xf32>
    %cst_33 = arith.constant 1.000000e+00 : f32
    %227 = vector.broadcast %cst_33 : f32 to vector<2x32xf32>
    %228 = arith.addf %227, %226 : vector<2x32xf32>
    %229 = arith.divf %227, %228 : vector<2x32xf32>
    %230 = vector.extract_strided_slice %223 {offsets = [0, 32], sizes = [2, 32], strides = [1, 1]} : vector<2x128xf32> to vector<2x32xf32>
    %231 = arith.negf %230 : vector<2x32xf32>
    %232 = math.exp %231 : vector<2x32xf32>
    %cst_34 = arith.constant 1.000000e+00 : f32
    %233 = vector.broadcast %cst_34 : f32 to vector<2x32xf32>
    %234 = arith.addf %233, %232 : vector<2x32xf32>
    %235 = arith.divf %233, %234 : vector<2x32xf32>
    %236 = vector.extract_strided_slice %223 {offsets = [0, 64], sizes = [2, 32], strides = [1, 1]} : vector<2x128xf32> to vector<2x32xf32>
    %237 = math.tanh %236 : vector<2x32xf32>
    %238 = vector.extract_strided_slice %223 {offsets = [0, 96], sizes = [2, 32], strides = [1, 1]} : vector<2x128xf32> to vector<2x32xf32>
    %239 = arith.negf %238 : vector<2x32xf32>
    %240 = math.exp %239 : vector<2x32xf32>
    %cst_35 = arith.constant 1.000000e+00 : f32
    %241 = vector.broadcast %cst_35 : f32 to vector<2x32xf32>
    %242 = arith.addf %241, %240 : vector<2x32xf32>
    %243 = arith.divf %241, %242 : vector<2x32xf32>
    %244 = arith.mulf %235, %192 : vector<2x32xf32>
    %245 = arith.mulf %229, %237 : vector<2x32xf32>
    %246 = arith.addf %244, %245 : vector<2x32xf32>
    %247 = math.tanh %246 : vector<2x32xf32>
    %248 = arith.mulf %243, %247 : vector<2x32xf32>
    %249 = tpu.concatenate %248, %246 in 1 : vector<2x32xf32>, vector<2x32xf32> -> vector<2x64xf32>
    %250 = arith.truncf %249 : vector<2x64xf32> to vector<2x64xbf16>
    %cst_36 = arith.constant dense<0.000000e+00> : vector<2x160xf32>
    %251 = tpu.matmul %250, %1, %cst_36 {dimension_numbers = #tpu.dot_dimension_numbers<[1], [0], [0], [1], [0, 0, 1, 1], [], []>} : vector<2x64xbf16>, vector<64x160xbf16>, vector<2x160xf32> -> vector<2x160xf32>
    %252 = vector.extract_strided_slice %251 {offsets = [0, 0], sizes = [2, 128], strides = [1, 1]} : vector<2x160xf32> to vector<2x128xf32>
    %253 = vector.extract_strided_slice %251 {offsets = [0, 128], sizes = [2, 32], strides = [1, 1]} : vector<2x160xf32> to vector<2x32xf32>
    %254 = vector.shape_cast %253 : vector<2x32xf32> to vector<2x1x32xf32>
    %255 = vector.broadcast %254 : vector<2x1x32xf32> to vector<2x8x32xf32>
    %256 = arith.addf %255, %17 : vector<2x8x32xf32>
    %257 = math.tanh %256 : vector<2x8x32xf32>
    %258 = vector.shape_cast %257 : vector<2x8x32xf32> to vector<16x32xf32>
    %259 = arith.truncf %258 : vector<16x32xf32> to vector<16x32xbf16>
    %cst_37 = arith.constant dense<0.000000e+00> : vector<16x1xf32>
    %260 = tpu.matmul %259, %3, %cst_37 {dimension_numbers = #tpu.dot_dimension_numbers<[1], [0], [0], [1], [0, 0, 1, 1], [], []>} : vector<16x32xbf16>, vector<32x1xbf16>, vector<16x1xf32> -> vector<16x1xf32>
    %261 = vector.shape_cast %260 : vector<16x1xf32> to vector<2x8x1xf32>
    %262 = math.exp %261 : vector<2x8x1xf32>
    %263 = vector.broadcast %262 : vector<2x8x1xf32> to vector<2x8x3xf32>
    %264 = arith.mulf %263, %23 : vector<2x8x3xf32>
    %cst_38 = arith.constant dense<0.000000e+00> : vector<2x3xf32>
    %265 = vector.multi_reduction <add>, %264, %cst_38 [1] : vector<2x8x3xf32> to vector<2x3xf32>
    %266 = vector.extract_strided_slice %265 {offsets = [0, 2], sizes = [2, 1], strides = [1, 1]} : vector<2x3xf32> to vector<2x1xf32>
    %267 = tpu.reciprocal %266 {approx = true} : vector<2x1xf32> -> vector<2x1xf32>
    %268 = vector.extract_strided_slice %265 {offsets = [0, 0], sizes = [2, 1], strides = [1, 1]} : vector<2x3xf32> to vector<2x1xf32>
    %269 = arith.mulf %268, %267 : vector<2x1xf32>
    %270 = vector.extract_strided_slice %30 {offsets = [0, 4], sizes = [2, 1], strides = [1, 1]} : vector<2x8xf32> to vector<2x1xf32>
    %271 = arith.addf %269, %270 : vector<2x1xf32>
    %272 = vector.broadcast %271 : vector<2x1xf32> to vector<2x128xf32>
    %273 = vector.broadcast %6 : vector<1x128xf32> to vector<2x128xf32>
    %274 = arith.mulf %272, %273 : vector<2x128xf32>
    %275 = arith.addf %274, %252 : vector<2x128xf32>
    %276 = vector.broadcast %7 : vector<1x128xf32> to vector<2x128xf32>
    %277 = arith.addf %275, %276 : vector<2x128xf32>
    %278 = vector.extract_strided_slice %277 {offsets = [0, 0], sizes = [2, 32], strides = [1, 1]} : vector<2x128xf32> to vector<2x32xf32>
    %279 = arith.negf %278 : vector<2x32xf32>
    %280 = math.exp %279 : vector<2x32xf32>
    %cst_39 = arith.constant 1.000000e+00 : f32
    %281 = vector.broadcast %cst_39 : f32 to vector<2x32xf32>
    %282 = arith.addf %281, %280 : vector<2x32xf32>
    %283 = arith.divf %281, %282 : vector<2x32xf32>
    %284 = vector.extract_strided_slice %277 {offsets = [0, 32], sizes = [2, 32], strides = [1, 1]} : vector<2x128xf32> to vector<2x32xf32>
    %285 = arith.negf %284 : vector<2x32xf32>
    %286 = math.exp %285 : vector<2x32xf32>
    %cst_40 = arith.constant 1.000000e+00 : f32
    %287 = vector.broadcast %cst_40 : f32 to vector<2x32xf32>
    %288 = arith.addf %287, %286 : vector<2x32xf32>
    %289 = arith.divf %287, %288 : vector<2x32xf32>
    %290 = vector.extract_strided_slice %277 {offsets = [0, 64], sizes = [2, 32], strides = [1, 1]} : vector<2x128xf32> to vector<2x32xf32>
    %291 = math.tanh %290 : vector<2x32xf32>
    %292 = vector.extract_strided_slice %277 {offsets = [0, 96], sizes = [2, 32], strides = [1, 1]} : vector<2x128xf32> to vector<2x32xf32>
    %293 = arith.negf %292 : vector<2x32xf32>
    %294 = math.exp %293 : vector<2x32xf32>
    %cst_41 = arith.constant 1.000000e+00 : f32
    %295 = vector.broadcast %cst_41 : f32 to vector<2x32xf32>
    %296 = arith.addf %295, %294 : vector<2x32xf32>
    %297 = arith.divf %295, %296 : vector<2x32xf32>
    %298 = arith.mulf %289, %246 : vector<2x32xf32>
    %299 = arith.mulf %283, %291 : vector<2x32xf32>
    %300 = arith.addf %298, %299 : vector<2x32xf32>
    %301 = math.tanh %300 : vector<2x32xf32>
    %302 = arith.mulf %297, %301 : vector<2x32xf32>
    %303 = tpu.concatenate %302, %300 in 1 : vector<2x32xf32>, vector<2x32xf32> -> vector<2x64xf32>
    %304 = arith.truncf %303 : vector<2x64xf32> to vector<2x64xbf16>
    %cst_42 = arith.constant dense<0.000000e+00> : vector<2x160xf32>
    %305 = tpu.matmul %304, %1, %cst_42 {dimension_numbers = #tpu.dot_dimension_numbers<[1], [0], [0], [1], [0, 0, 1, 1], [], []>} : vector<2x64xbf16>, vector<64x160xbf16>, vector<2x160xf32> -> vector<2x160xf32>
    %306 = vector.extract_strided_slice %305 {offsets = [0, 0], sizes = [2, 128], strides = [1, 1]} : vector<2x160xf32> to vector<2x128xf32>
    %307 = vector.extract_strided_slice %305 {offsets = [0, 128], sizes = [2, 32], strides = [1, 1]} : vector<2x160xf32> to vector<2x32xf32>
    %308 = vector.shape_cast %307 : vector<2x32xf32> to vector<2x1x32xf32>
    %309 = vector.broadcast %308 : vector<2x1x32xf32> to vector<2x8x32xf32>
    %310 = arith.addf %309, %17 : vector<2x8x32xf32>
    %311 = math.tanh %310 : vector<2x8x32xf32>
    %312 = vector.shape_cast %311 : vector<2x8x32xf32> to vector<16x32xf32>
    %313 = arith.truncf %312 : vector<16x32xf32> to vector<16x32xbf16>
    %cst_43 = arith.constant dense<0.000000e+00> : vector<16x1xf32>
    %314 = tpu.matmul %313, %3, %cst_43 {dimension_numbers = #tpu.dot_dimension_numbers<[1], [0], [0], [1], [0, 0, 1, 1], [], []>} : vector<16x32xbf16>, vector<32x1xbf16>, vector<16x1xf32> -> vector<16x1xf32>
    %315 = vector.shape_cast %314 : vector<16x1xf32> to vector<2x8x1xf32>
    %316 = math.exp %315 : vector<2x8x1xf32>
    %317 = vector.broadcast %316 : vector<2x8x1xf32> to vector<2x8x3xf32>
    %318 = arith.mulf %317, %23 : vector<2x8x3xf32>
    %cst_44 = arith.constant dense<0.000000e+00> : vector<2x3xf32>
    %319 = vector.multi_reduction <add>, %318, %cst_44 [1] : vector<2x8x3xf32> to vector<2x3xf32>
    %320 = vector.extract_strided_slice %319 {offsets = [0, 2], sizes = [2, 1], strides = [1, 1]} : vector<2x3xf32> to vector<2x1xf32>
    %321 = tpu.reciprocal %320 {approx = true} : vector<2x1xf32> -> vector<2x1xf32>
    %322 = vector.extract_strided_slice %319 {offsets = [0, 0], sizes = [2, 1], strides = [1, 1]} : vector<2x3xf32> to vector<2x1xf32>
    %323 = arith.mulf %322, %321 : vector<2x1xf32>
    %324 = vector.extract_strided_slice %30 {offsets = [0, 5], sizes = [2, 1], strides = [1, 1]} : vector<2x8xf32> to vector<2x1xf32>
    %325 = arith.addf %323, %324 : vector<2x1xf32>
    %326 = vector.broadcast %325 : vector<2x1xf32> to vector<2x128xf32>
    %327 = vector.broadcast %6 : vector<1x128xf32> to vector<2x128xf32>
    %328 = arith.mulf %326, %327 : vector<2x128xf32>
    %329 = arith.addf %328, %306 : vector<2x128xf32>
    %330 = vector.broadcast %7 : vector<1x128xf32> to vector<2x128xf32>
    %331 = arith.addf %329, %330 : vector<2x128xf32>
    %332 = vector.extract_strided_slice %331 {offsets = [0, 0], sizes = [2, 32], strides = [1, 1]} : vector<2x128xf32> to vector<2x32xf32>
    %333 = arith.negf %332 : vector<2x32xf32>
    %334 = math.exp %333 : vector<2x32xf32>
    %cst_45 = arith.constant 1.000000e+00 : f32
    %335 = vector.broadcast %cst_45 : f32 to vector<2x32xf32>
    %336 = arith.addf %335, %334 : vector<2x32xf32>
    %337 = arith.divf %335, %336 : vector<2x32xf32>
    %338 = vector.extract_strided_slice %331 {offsets = [0, 32], sizes = [2, 32], strides = [1, 1]} : vector<2x128xf32> to vector<2x32xf32>
    %339 = arith.negf %338 : vector<2x32xf32>
    %340 = math.exp %339 : vector<2x32xf32>
    %cst_46 = arith.constant 1.000000e+00 : f32
    %341 = vector.broadcast %cst_46 : f32 to vector<2x32xf32>
    %342 = arith.addf %341, %340 : vector<2x32xf32>
    %343 = arith.divf %341, %342 : vector<2x32xf32>
    %344 = vector.extract_strided_slice %331 {offsets = [0, 64], sizes = [2, 32], strides = [1, 1]} : vector<2x128xf32> to vector<2x32xf32>
    %345 = math.tanh %344 : vector<2x32xf32>
    %346 = vector.extract_strided_slice %331 {offsets = [0, 96], sizes = [2, 32], strides = [1, 1]} : vector<2x128xf32> to vector<2x32xf32>
    %347 = arith.negf %346 : vector<2x32xf32>
    %348 = math.exp %347 : vector<2x32xf32>
    %cst_47 = arith.constant 1.000000e+00 : f32
    %349 = vector.broadcast %cst_47 : f32 to vector<2x32xf32>
    %350 = arith.addf %349, %348 : vector<2x32xf32>
    %351 = arith.divf %349, %350 : vector<2x32xf32>
    %352 = arith.mulf %343, %300 : vector<2x32xf32>
    %353 = arith.mulf %337, %345 : vector<2x32xf32>
    %354 = arith.addf %352, %353 : vector<2x32xf32>
    %355 = math.tanh %354 : vector<2x32xf32>
    %356 = arith.mulf %351, %355 : vector<2x32xf32>
    %357 = tpu.concatenate %356, %354 in 1 : vector<2x32xf32>, vector<2x32xf32> -> vector<2x64xf32>
    %358 = arith.truncf %357 : vector<2x64xf32> to vector<2x64xbf16>
    %cst_48 = arith.constant dense<0.000000e+00> : vector<2x160xf32>
    %359 = tpu.matmul %358, %1, %cst_48 {dimension_numbers = #tpu.dot_dimension_numbers<[1], [0], [0], [1], [0, 0, 1, 1], [], []>} : vector<2x64xbf16>, vector<64x160xbf16>, vector<2x160xf32> -> vector<2x160xf32>
    %360 = vector.extract_strided_slice %359 {offsets = [0, 0], sizes = [2, 128], strides = [1, 1]} : vector<2x160xf32> to vector<2x128xf32>
    %361 = vector.extract_strided_slice %359 {offsets = [0, 128], sizes = [2, 32], strides = [1, 1]} : vector<2x160xf32> to vector<2x32xf32>
    %362 = vector.shape_cast %361 : vector<2x32xf32> to vector<2x1x32xf32>
    %363 = vector.broadcast %362 : vector<2x1x32xf32> to vector<2x8x32xf32>
    %364 = arith.addf %363, %17 : vector<2x8x32xf32>
    %365 = math.tanh %364 : vector<2x8x32xf32>
    %366 = vector.shape_cast %365 : vector<2x8x32xf32> to vector<16x32xf32>
    %367 = arith.truncf %366 : vector<16x32xf32> to vector<16x32xbf16>
    %cst_49 = arith.constant dense<0.000000e+00> : vector<16x1xf32>
    %368 = tpu.matmul %367, %3, %cst_49 {dimension_numbers = #tpu.dot_dimension_numbers<[1], [0], [0], [1], [0, 0, 1, 1], [], []>} : vector<16x32xbf16>, vector<32x1xbf16>, vector<16x1xf32> -> vector<16x1xf32>
    %369 = vector.shape_cast %368 : vector<16x1xf32> to vector<2x8x1xf32>
    %370 = math.exp %369 : vector<2x8x1xf32>
    %371 = vector.broadcast %370 : vector<2x8x1xf32> to vector<2x8x3xf32>
    %372 = arith.mulf %371, %23 : vector<2x8x3xf32>
    %cst_50 = arith.constant dense<0.000000e+00> : vector<2x3xf32>
    %373 = vector.multi_reduction <add>, %372, %cst_50 [1] : vector<2x8x3xf32> to vector<2x3xf32>
    %374 = vector.extract_strided_slice %373 {offsets = [0, 2], sizes = [2, 1], strides = [1, 1]} : vector<2x3xf32> to vector<2x1xf32>
    %375 = tpu.reciprocal %374 {approx = true} : vector<2x1xf32> -> vector<2x1xf32>
    %376 = vector.extract_strided_slice %373 {offsets = [0, 0], sizes = [2, 1], strides = [1, 1]} : vector<2x3xf32> to vector<2x1xf32>
    %377 = arith.mulf %376, %375 : vector<2x1xf32>
    %378 = vector.extract_strided_slice %30 {offsets = [0, 6], sizes = [2, 1], strides = [1, 1]} : vector<2x8xf32> to vector<2x1xf32>
    %379 = arith.addf %377, %378 : vector<2x1xf32>
    %380 = vector.broadcast %379 : vector<2x1xf32> to vector<2x128xf32>
    %381 = vector.broadcast %6 : vector<1x128xf32> to vector<2x128xf32>
    %382 = arith.mulf %380, %381 : vector<2x128xf32>
    %383 = arith.addf %382, %360 : vector<2x128xf32>
    %384 = vector.broadcast %7 : vector<1x128xf32> to vector<2x128xf32>
    %385 = arith.addf %383, %384 : vector<2x128xf32>
    %386 = vector.extract_strided_slice %385 {offsets = [0, 0], sizes = [2, 32], strides = [1, 1]} : vector<2x128xf32> to vector<2x32xf32>
    %387 = arith.negf %386 : vector<2x32xf32>
    %388 = math.exp %387 : vector<2x32xf32>
    %cst_51 = arith.constant 1.000000e+00 : f32
    %389 = vector.broadcast %cst_51 : f32 to vector<2x32xf32>
    %390 = arith.addf %389, %388 : vector<2x32xf32>
    %391 = arith.divf %389, %390 : vector<2x32xf32>
    %392 = vector.extract_strided_slice %385 {offsets = [0, 32], sizes = [2, 32], strides = [1, 1]} : vector<2x128xf32> to vector<2x32xf32>
    %393 = arith.negf %392 : vector<2x32xf32>
    %394 = math.exp %393 : vector<2x32xf32>
    %cst_52 = arith.constant 1.000000e+00 : f32
    %395 = vector.broadcast %cst_52 : f32 to vector<2x32xf32>
    %396 = arith.addf %395, %394 : vector<2x32xf32>
    %397 = arith.divf %395, %396 : vector<2x32xf32>
    %398 = vector.extract_strided_slice %385 {offsets = [0, 64], sizes = [2, 32], strides = [1, 1]} : vector<2x128xf32> to vector<2x32xf32>
    %399 = math.tanh %398 : vector<2x32xf32>
    %400 = vector.extract_strided_slice %385 {offsets = [0, 96], sizes = [2, 32], strides = [1, 1]} : vector<2x128xf32> to vector<2x32xf32>
    %401 = arith.negf %400 : vector<2x32xf32>
    %402 = math.exp %401 : vector<2x32xf32>
    %cst_53 = arith.constant 1.000000e+00 : f32
    %403 = vector.broadcast %cst_53 : f32 to vector<2x32xf32>
    %404 = arith.addf %403, %402 : vector<2x32xf32>
    %405 = arith.divf %403, %404 : vector<2x32xf32>
    %406 = arith.mulf %397, %354 : vector<2x32xf32>
    %407 = arith.mulf %391, %399 : vector<2x32xf32>
    %408 = arith.addf %406, %407 : vector<2x32xf32>
    %409 = math.tanh %408 : vector<2x32xf32>
    %410 = arith.mulf %405, %409 : vector<2x32xf32>
    %411 = tpu.concatenate %410, %408 in 1 : vector<2x32xf32>, vector<2x32xf32> -> vector<2x64xf32>
    %412 = arith.truncf %411 : vector<2x64xf32> to vector<2x64xbf16>
    %cst_54 = arith.constant dense<0.000000e+00> : vector<2x160xf32>
    %413 = tpu.matmul %412, %1, %cst_54 {dimension_numbers = #tpu.dot_dimension_numbers<[1], [0], [0], [1], [0, 0, 1, 1], [], []>} : vector<2x64xbf16>, vector<64x160xbf16>, vector<2x160xf32> -> vector<2x160xf32>
    %414 = vector.extract_strided_slice %413 {offsets = [0, 0], sizes = [2, 128], strides = [1, 1]} : vector<2x160xf32> to vector<2x128xf32>
    %415 = vector.extract_strided_slice %413 {offsets = [0, 128], sizes = [2, 32], strides = [1, 1]} : vector<2x160xf32> to vector<2x32xf32>
    %416 = vector.shape_cast %415 : vector<2x32xf32> to vector<2x1x32xf32>
    %417 = vector.broadcast %416 : vector<2x1x32xf32> to vector<2x8x32xf32>
    %418 = arith.addf %417, %17 : vector<2x8x32xf32>
    %419 = math.tanh %418 : vector<2x8x32xf32>
    %420 = vector.shape_cast %419 : vector<2x8x32xf32> to vector<16x32xf32>
    %421 = arith.truncf %420 : vector<16x32xf32> to vector<16x32xbf16>
    %cst_55 = arith.constant dense<0.000000e+00> : vector<16x1xf32>
    %422 = tpu.matmul %421, %3, %cst_55 {dimension_numbers = #tpu.dot_dimension_numbers<[1], [0], [0], [1], [0, 0, 1, 1], [], []>} : vector<16x32xbf16>, vector<32x1xbf16>, vector<16x1xf32> -> vector<16x1xf32>
    %423 = vector.shape_cast %422 : vector<16x1xf32> to vector<2x8x1xf32>
    %424 = math.exp %423 : vector<2x8x1xf32>
    %425 = vector.broadcast %424 : vector<2x8x1xf32> to vector<2x8x3xf32>
    %426 = arith.mulf %425, %23 : vector<2x8x3xf32>
    %cst_56 = arith.constant dense<0.000000e+00> : vector<2x3xf32>
    %427 = vector.multi_reduction <add>, %426, %cst_56 [1] : vector<2x8x3xf32> to vector<2x3xf32>
    %428 = vector.extract_strided_slice %427 {offsets = [0, 2], sizes = [2, 1], strides = [1, 1]} : vector<2x3xf32> to vector<2x1xf32>
    %429 = tpu.reciprocal %428 {approx = true} : vector<2x1xf32> -> vector<2x1xf32>
    %430 = vector.extract_strided_slice %427 {offsets = [0, 0], sizes = [2, 1], strides = [1, 1]} : vector<2x3xf32> to vector<2x1xf32>
    %431 = arith.mulf %430, %429 : vector<2x1xf32>
    %432 = vector.extract_strided_slice %427 {offsets = [0, 1], sizes = [2, 1], strides = [1, 1]} : vector<2x3xf32> to vector<2x1xf32>
    %433 = arith.mulf %432, %429 : vector<2x1xf32>
    %434 = vector.extract_strided_slice %30 {offsets = [0, 7], sizes = [2, 1], strides = [1, 1]} : vector<2x8xf32> to vector<2x1xf32>
    %435 = arith.addf %431, %434 : vector<2x1xf32>
    %436 = vector.broadcast %435 : vector<2x1xf32> to vector<2x128xf32>
    %437 = vector.broadcast %6 : vector<1x128xf32> to vector<2x128xf32>
    %438 = arith.mulf %436, %437 : vector<2x128xf32>
    %439 = arith.addf %438, %414 : vector<2x128xf32>
    %440 = vector.broadcast %7 : vector<1x128xf32> to vector<2x128xf32>
    %441 = arith.addf %439, %440 : vector<2x128xf32>
    %442 = vector.extract_strided_slice %441 {offsets = [0, 0], sizes = [2, 32], strides = [1, 1]} : vector<2x128xf32> to vector<2x32xf32>
    %443 = arith.negf %442 : vector<2x32xf32>
    %444 = math.exp %443 : vector<2x32xf32>
    %cst_57 = arith.constant 1.000000e+00 : f32
    %445 = vector.broadcast %cst_57 : f32 to vector<2x32xf32>
    %446 = arith.addf %445, %444 : vector<2x32xf32>
    %447 = arith.divf %445, %446 : vector<2x32xf32>
    %448 = vector.extract_strided_slice %441 {offsets = [0, 32], sizes = [2, 32], strides = [1, 1]} : vector<2x128xf32> to vector<2x32xf32>
    %449 = arith.negf %448 : vector<2x32xf32>
    %450 = math.exp %449 : vector<2x32xf32>
    %cst_58 = arith.constant 1.000000e+00 : f32
    %451 = vector.broadcast %cst_58 : f32 to vector<2x32xf32>
    %452 = arith.addf %451, %450 : vector<2x32xf32>
    %453 = arith.divf %451, %452 : vector<2x32xf32>
    %454 = vector.extract_strided_slice %441 {offsets = [0, 64], sizes = [2, 32], strides = [1, 1]} : vector<2x128xf32> to vector<2x32xf32>
    %455 = math.tanh %454 : vector<2x32xf32>
    %456 = vector.extract_strided_slice %441 {offsets = [0, 96], sizes = [2, 32], strides = [1, 1]} : vector<2x128xf32> to vector<2x32xf32>
    %457 = arith.negf %456 : vector<2x32xf32>
    %458 = math.exp %457 : vector<2x32xf32>
    %cst_59 = arith.constant 1.000000e+00 : f32
    %459 = vector.broadcast %cst_59 : f32 to vector<2x32xf32>
    %460 = arith.addf %459, %458 : vector<2x32xf32>
    %461 = arith.divf %459, %460 : vector<2x32xf32>
    %462 = arith.mulf %453, %408 : vector<2x32xf32>
    %463 = arith.mulf %447, %455 : vector<2x32xf32>
    %464 = arith.addf %462, %463 : vector<2x32xf32>
    %465 = math.tanh %464 : vector<2x32xf32>
    %466 = arith.mulf %461, %465 : vector<2x32xf32>
    %467 = vector.broadcast %8 : vector<1x32xf32> to vector<2x32xf32>
    %468 = arith.mulf %466, %467 : vector<2x32xf32>
    %cst_60 = arith.constant dense<0.000000e+00> : vector<2xf32>
    %469 = vector.multi_reduction <add>, %468, %cst_60 [1] : vector<2x32xf32> to vector<2xf32>
    %470 = vector.shape_cast %469 : vector<2xf32> to vector<2x1xf32>
    %471 = arith.addf %470, %433 : vector<2x1xf32>
    %c2 = arith.constant 2 : index
    %472 = memref.load %arg5[%c2] : memref<3xf32, #tpu.memory_space<smem>>
    %473 = vector.broadcast %472 : f32 to vector<2x1xf32>
    %474 = arith.addf %471, %473 : vector<2x1xf32>
    %c0_61 = arith.constant 0 : index
    %c0_62 = arith.constant 0 : index
    %475 = vector.load %arg6[%c0_61, %c0_62] : memref<2x1xf32, #tpu.memory_space<vmem>>, vector<2x1xf32>
    tpu.vector_store %arg6[%c0_61, %c0_62], %474 {strides = array<i32>} : memref<2x1xf32, #tpu.memory_space<vmem>>, vector<2x1xf32>,
    return
  }
  func.func @transform_0(%arg0: i32) -> (i32, i32, i32) {
    %c0_i32 = arith.constant 0 : i32
    %c0_i32_0 = arith.constant 0 : i32
    %c0_i32_1 = arith.constant 0 : i32
    %c0_i32_2 = arith.constant 0 : i32
    return %c0_i32, %c0_i32_0, %c0_i32_1 : i32, i32, i32
  }
  func.func @transform_1(%arg0: i32) -> (i32, i32) {
    %c0_i32 = arith.constant 0 : i32
    %c0_i32_0 = arith.constant 0 : i32
    %c0_i32_1 = arith.constant 0 : i32
    return %c0_i32, %c0_i32_0 : i32, i32
  }
  func.func @transform_2(%arg0: i32) -> (i32, i32) {
    %c0_i32 = arith.constant 0 : i32
    %c0_i32_0 = arith.constant 0 : i32
    %c0_i32_1 = arith.constant 0 : i32
    return %c0_i32, %c0_i32_0 : i32, i32
  }
  func.func @transform_3(%arg0: i32) -> (i32, i32) {
    %c0_i32 = arith.constant 0 : i32
    %c0_i32_0 = arith.constant 0 : i32
    %c0_i32_1 = arith.constant 0 : i32
    return %c0_i32, %c0_i32_0 : i32, i32
  }
  func.func @transform_4(%arg0: i32) -> i32 {
    %c0_i32 = arith.constant 0 : i32
    %c0_i32_0 = arith.constant 0 : i32
    return %c0_i32 : i32
  }
  func.func @transform_5(%arg0: i32) -> (i32, i32) {
    %c0_i32 = arith.constant 0 : i32
    %c0_i32_0 = arith.constant 0 : i32
    %c0_i32_1 = arith.constant 0 : i32
    return %c0_i32, %c0_i32_0 : i32, i32
  }
}

</mosaic_0001>

<llo_original>
// kernel: tpu_custom_call.1
$region0: #{tpu_custom_call.1}
  #allocation0 [shape = 'u32[]', space=smem, size = 0x4, offset = 0x4, fixed_abs, tag = 'smem constant byte address 0x4 - core index']
  #allocation1 [shape = 'u32[144,128]{1,0:T(1,128)}', space=vmem, size = 0x12000, scoped, tag = 'internal scratch']
  %s0 = inlined_call_operand.vmem [shape: f32[2,8,32], index: 0, kind: input, shape index: {}]
  %s1 = inlined_call_operand.vmem [shape: f32[2,8], index: 1, kind: input, shape index: {}]
  %s2 = inlined_call_operand.vmem [shape: bf16[96,160], index: 2, kind: input, shape index: {}]
  %s3 = inlined_call_operand.vmem [shape: f32[8,160], index: 3, kind: input, shape index: {}]
  %s4 = inlined_call_operand.vmem [shape: f32[3], index: 4, kind: input, shape index: {}]
  %s5 = inlined_call_operand.vmem [shape: f32[2,1], index: 5, kind: output, shape index: {}]
  %s6 = sld [smem:[#allocation0]]
  $region34: #{tpu_custom_call.1} parent=0
    _
  %s8 = ssub.s32 1, %s6
  %s9 = scalar_select 0, %s8, %s6
  $region1: #{tpu_custom_call.1} parent=0
    #allocation2 [shape = 'u8[512]{0}', space=smem, size = 0x200, scoped, tag = 'input window, operand 4, single buffered']
    #allocation3 [shape = 's32[1]{0}', space=sflag, size = 0x4, scoped, tag = 'scoped memory for tpu_custom_call.1']
    %10 = vsyncpa [#allocation3], 0
    // Predicated region
    $region2: #{tpu_custom_call.1} parent=1 // pred_check
      _
    $region3: #{tpu_custom_call.1} parent=1 // pred_check_branch
      %12 = sbr.rel (0) target = $region5
    $region4: #{tpu_custom_call.1} parent=1 // pred_region
      _
    $region5: #{tpu_custom_call.1} parent=1 // pred_fallthru
      _
    // Predicated region
    $region6: #{tpu_custom_call.1} parent=1 // pred_check
      _
    $region7: #{tpu_custom_call.1} parent=1 // pred_check_branch
      %14 = sbr.rel (0) target = $region9
    $region8: #{tpu_custom_call.1} parent=1 // pred_region
      _
    $region9: #{tpu_custom_call.1} parent=1 // pred_fallthru
      _
    // Predicated region
    $region10: #{tpu_custom_call.1} parent=1 // pred_check
      _
    $region11: #{tpu_custom_call.1} parent=1 // pred_check_branch
      %16 = sbr.rel (0) target = $region13
    $region12: #{tpu_custom_call.1} parent=1 // pred_region
      _
    $region13: #{tpu_custom_call.1} parent=1 // pred_fallthru
      _
    // Predicated region
    $region14: #{tpu_custom_call.1} parent=1 // pred_check
      _
    $region15: #{tpu_custom_call.1} parent=1 // pred_check_branch
      %18 = sbr.rel (0) target = $region17
    $region16: #{tpu_custom_call.1} parent=1 // pred_region
      _
    $region17: #{tpu_custom_call.1} parent=1 // pred_fallthru
      _
    // Predicated region
    $region18: #{tpu_custom_call.1} parent=1 // pred_check
      _
    $region19: #{tpu_custom_call.1} parent=1 // pred_check_branch
      %20 = sbr.rel (0) target = $region21
    $region20: #{tpu_custom_call.1} parent=1 // pred_region
      %s22 = ssub.s32 16, 16
      %23 = vsyncadd [#allocation3], %s22
      %s25 = sshll.u32 %s4, 4
      %s26 = int_to_ptr.vmem [resolvable:$true] %s25
      %28 = dma.vmem_to_smem %s26, 16, [#allocation2], [#allocation3]
    $region21: #{tpu_custom_call.1} parent=1 // pred_fallthru
      _
    // Predicated region
    $region22: #{tpu_custom_call.1} parent=1 // pred_check
      _
    $region23: #{tpu_custom_call.1} parent=1 // pred_check_branch
      %30 = sbr.rel (0) target = $region25
    $region24: #{tpu_custom_call.1} parent=1 // pred_region
      %31 = dma.done [#allocation3], 16
    $region25: #{tpu_custom_call.1} parent=1 // pred_fallthru
      _
    %32 = sfence
    %v34 = vld [vmem:[%s2] sm:$0xff]
    %v35 = vld [vmem:[%s2 + $0x8] sm:$0xff]
    %v36 = vld [vmem:[%s2 + $0x10] sm:$0xff]
    %v37 = vld [vmem:[%s2 + $0x18] sm:$0xff]
    %v38 = vld [vmem:[%s2 + $0x20] sm:$0xff]
    %v39 = vld [vmem:[%s2 + $0x28] sm:$0xff]
    %v40 = vld [vmem:[%s2 + $0x30] sm:$0xff]
    %v41 = vld [vmem:[%s2 + $0x38] sm:$0xff]
    %v42 = vld [vmem:[%s2 + $0x40] sm:$0xff]
    %v43 = vld [vmem:[%s2 + $0x48] sm:$0xff]
    %v44 = vld [vmem:[%s2 + $0x50] sm:$0xff]
    %v45 = vld [vmem:[%s2 + $0x58] sm:$0xff]
    %v46 = vld [vmem:[%s3] sm:$0xff]
    %v47 = vld [vmem:[%s0] sm:$0xff]
    %v48 = vld [vmem:[%s0 + $0x8] sm:$0xff]
    %v49 = vpack.c.bf16 %v48, %v47
    %v54 = vunpack.c.l.b16 %v42
    %v55 = vunpack.c.h.b16 %v42
    %v56 = vunpack.c.l.b16 %v43
    %v57 = vunpack.c.h.b16 %v43
    %v58 = vunpack.c.l.b16 %v44
    %v59 = vunpack.c.h.b16 %v44
    %v60 = vunpack.c.l.b16 %v45
    %v61 = vunpack.c.h.b16 %v45
    %v62 = vpack.c.b16 %v56, %v54
    %v63 = vpack.c.b16 %v57, %v55
    %v64 = vpack.c.b16 %v60, %v58
    %v65 = vpack.c.b16 %v61, %v59
    %vm70 = vcmask 261120
    %v72 = vsel %vm70, %v49, 0
    %74 = vmatprep.subr.bf16.mxu0 %v63
    %75 = vmatpush1.bf16.msra.mxu0 %v62
    %76 = vmatprep.subr.bf16.mxu0 %v65
    %77 = vmatpush1.bf16.msra.mxu0 %v64
    %78 = vmatprep.subr.bf16.mxu0 0
    %79 = vmatpush1.bf16.msra.mxu0 0
    %80 = vmatprep.subr.bf16.mxu0 0
    %81 = vmatpush1.bf16.msra.mxu0 0
    %82 = vmatprep.subr.bf16.mxu0 0
    %83 = vmatpush1.bf16.msra.mxu0 0
    %84 = vmatprep.subr.bf16.mxu0 0
    %85 = vmatpush1.bf16.msra.mxu0 0
    %86 = vmatprep.subr.bf16.mxu0 0
    %87 = vmatpush1.bf16.msra.mxu0 0
    %88 = vmatprep.subr.bf16.mxu0 0
    %89 = vmatpush1.bf16.msra.mxu0 0
    %90 = vmatprep.subr.bf16.mxu0 0
    %91 = vmatpush1.bf16.msra.mxu0 0
    %92 = vmatprep.subr.bf16.mxu0 0
    %93 = vmatpush1.bf16.msra.mxu0 0
    %94 = vmatprep.subr.bf16.mxu0 0
    %95 = vmatpush1.bf16.msra.mxu0 0
    %96 = vmatprep.subr.bf16.mxu0 0
    %97 = vmatpush1.bf16.msra.mxu0 0
    %98 = vmatprep.subr.bf16.mxu0 0
    %99 = vmatpush1.bf16.msra.mxu0 0
    %100 = vmatprep.subr.bf16.mxu0 0
    %101 = vmatpush1.bf16.msra.mxu0 0
    %102 = vmatprep.subr.bf16.mxu0 0
    %103 = vmatpush1.bf16.msra.mxu0 0
    %104 = vmatprep.subr.bf16.mxu0 0
    %105 = vmatpush1.bf16.msra.mxu0 0
    %106 = vmatprep.mubr.bf16.mxu0 0
    %107 = vmatmul.mubr.bf16.gmra.mrb[0].mxu0 %v72
    %v108 = vpop.f32.mrb[0].mxu0
    %v109 = vadd.f32 0.0, %v108
    %v110 = vpop.f32.mrb[0].mxu0
    %v111 = vpop.f32.mrb[0].mxu0
    %v112 = vadd.f32 0.0, %v111
    %v113 = vpop.f32.mrb[0].mxu0
    %114 = vdwg.mxu0
    %v115 = vlaneseq
    %v116 = vshrl.u32 %v115, 7
    %v117 = vsub.s32 0, %v116
    %v118 = vrot.slane %v46, %v117
    %v119 = vadd.f32 %v109, %v118
    %v120 = vadd.f32 %v112, %v118
    %123 = vrot.lane.b32.xlu0 %v109, 96
    %v124 = vpop.permute.xlu0 %123
    %125 = vrot.lane.b32.xlu0 %v112, 96
    %v126 = vpop.permute.xlu0 %125
    %vm129 = vcmask 15360
    %v130 = vsel %vm129, %v124, 1.0
    %v131 = vsel %vm129, %v126, 1.0
    %v132 = vld [vmem:[%s1] sm:$0x3]
    %s133 = sld [smem:[#allocation2]]
    %v134 = vstv %s133
    %v135 = vmul.f32 %v132, %v134
    %s136 = sld [smem:[#allocation2 + $0x1]]
    %v137 = vstv %s136
    %v138 = vadd.f32 %v135, %v137
    %v139 = vpack.c.bf16 0.0, 0.0
    %v148 = vunpack.c.l.b16 %v34
    %v149 = vunpack.c.h.b16 %v34
    %v150 = vunpack.c.l.b16 %v35
    %v151 = vunpack.c.h.b16 %v35
    %v152 = vunpack.c.l.b16 %v36
    %v153 = vunpack.c.h.b16 %v36
    %v154 = vunpack.c.l.b16 %v37
    %v155 = vunpack.c.h.b16 %v37
    %v156 = vunpack.c.l.b16 %v38
    %v157 = vunpack.c.h.b16 %v38
    %v158 = vunpack.c.l.b16 %v39
    %v159 = vunpack.c.h.b16 %v39
    %v160 = vunpack.c.l.b16 %v40
    %v161 = vunpack.c.h.b16 %v40
    %v162 = vunpack.c.l.b16 %v41
    %v163 = vunpack.c.h.b16 %v41
    %v164 = vpack.c.b16 %v150, %v148
    %v165 = vpack.c.b16 %v151, %v149
    %v166 = vpack.c.b16 %v154, %v152
    %v167 = vpack.c.b16 %v155, %v153
    %v168 = vpack.c.b16 %v158, %v156
    %v169 = vpack.c.b16 %v159, %v157
    %v170 = vpack.c.b16 %v162, %v160
    %v171 = vpack.c.b16 %v163, %v161
    %vm180 = vcmask 523264
    %v182 = vsel %vm180, %v139, 0
    %184 = vmatprep.subr.bf16.mxu0 %v165
    %185 = vmatpush1.bf16.msra.mxu0 %v164
    %186 = vmatprep.subr.bf16.mxu0 %v167
    %187 = vmatpush1.bf16.msra.mxu0 %v166
    %188 = vmatprep.subr.bf16.mxu0 %v169
    %189 = vmatpush1.bf16.msra.mxu0 %v168
    %190 = vmatprep.subr.bf16.mxu0 %v171
    %191 = vmatpush1.bf16.msra.mxu0 %v170
    %192 = vmatprep.subr.bf16.mxu0 0
    %193 = vmatpush1.bf16.msra.mxu0 0
    %194 = vmatprep.subr.bf16.mxu0 0
    %195 = vmatpush1.bf16.msra.mxu0 0
    %196 = vmatprep.subr.bf16.mxu0 0
    %197 = vmatpush1.bf16.msra.mxu0 0
    %198 = vmatprep.subr.bf16.mxu0 0
    %199 = vmatpush1.bf16.msra.mxu0 0
    %200 = vmatprep.subr.bf16.mxu0 0
    %201 = vmatpush1.bf16.msra.mxu0 0
    %202 = vmatprep.subr.bf16.mxu0 0
    %203 = vmatpush1.bf16.msra.mxu0 0
    %204 = vmatprep.subr.bf16.mxu0 0
    %205 = vmatpush1.bf16.msra.mxu0 0
    %206 = vmatprep.subr.bf16.mxu0 0
    %207 = vmatpush1.bf16.msra.mxu0 0
    %208 = vmatprep.subr.bf16.mxu0 0
    %209 = vmatpush1.bf16.msra.mxu0 0
    %210 = vmatprep.subr.bf16.mxu0 0
    %211 = vmatpush1.bf16.msra.mxu0 0
    %212 = vmatprep.subr.bf16.mxu0 0
    %213 = vmatpush1.bf16.msra.mxu0 0
    %214 = vmatprep.subr.bf16.mxu0 0
    %215 = vmatpush1.bf16.msra.mxu0 0
    %216 = vmatprep.mubr.bf16.mxu0 0
    %217 = vmatmul.mubr.bf16.gmra.mrb[0].mxu0 %v182
    %v218 = vpop.f32.mrb[0].mxu0
    %v219 = vadd.f32 0.0, %v218
    %v220 = vpop.f32.mrb[0].mxu0
    %v221 = vadd.f32 0.0, %v220
    %v222 = vpop.f32.mrb[0].mxu0
    %v223 = vpop.f32.mrb[0].mxu0
    %224 = vdwg.mxu0
    %v227 = vunpack.c.l.s4 1966171168
    %v228 = vunpack.c.0.s8 %v227
    %v229 = vlaneseq
    %v230 = vshrl.u32 %v229, 7
    %v231 = vsub.s32 %v228, %v230
    %v232 = vrot.slane %v221, %v231
    %v233 = vcombine.high %v232, %v232
    %v235 = vunpack.c.l.s4 1966171168
    %v236 = vunpack.c.0.s8 %v235
    %v237 = vlaneseq
    %v238 = vshrl.u32 %v237, 7
    %v239 = vsub.s32 %v236, %v238
    %v240 = vrot.slane %v232, %v239
    %v242 = vunpack.c.l.s4 1966171168
    %v243 = vunpack.c.0.s8 %v242
    %v244 = vlaneseq
    %v245 = vshrl.u32 %v244, 7
    %v246 = vsub.s32 %v243, %v245
    %v247 = vrot.slane %v233, %v246
    %v248 = vlaneseq
    %v249 = vshrl.u32 %v248, 7
    %v250 = vsub.s32 0, %v249
    %v251 = vrot.slane %v240, %v250
    %v252 = vlaneseq
    %v253 = vshrl.u32 %v252, 7
    %v254 = vsub.s32 0, %v253
    %v255 = vrot.slane %v247, %v254
    %v258 = vadd.f32 %v251, %v119
    %v259 = vadd.f32 %v255, %v120
    %v260 = vtanh.pop %v258
    %v261 = vtanh.pop %v259
    %v262 = vpack.c.bf16 %v261, %v260
    %263 = vrot.lane.b32.xlu0 %v62, 94
    %v264 = vpop.permute.xlu0 %263
    %265 = vrot.lane.b32.xlu0 %v64, 94
    %v266 = vpop.permute.xlu0 %265
    %v270 = vsel %vm70, %v262, 0
    %272 = vmatprep.subr.bf16.mxu0 0
    %273 = vmatpush1.bf16.msra.mxu0 %v264
    %274 = vmatprep.subr.bf16.mxu0 0
    %275 = vmatpush1.bf16.msra.mxu0 %v266
    %276 = vmatprep.subr.bf16.mxu0 0
    %277 = vmatpush1.bf16.msra.mxu0 0
    %278 = vmatprep.subr.bf16.mxu0 0
    %279 = vmatpush1.bf16.msra.mxu0 0
    %280 = vmatprep.subr.bf16.mxu0 0
    %281 = vmatpush1.bf16.msra.mxu0 0
    %282 = vmatprep.subr.bf16.mxu0 0
    %283 = vmatpush1.bf16.msra.mxu0 0
    %284 = vmatprep.subr.bf16.mxu0 0
    %285 = vmatpush1.bf16.msra.mxu0 0
    %286 = vmatprep.subr.bf16.mxu0 0
    %287 = vmatpush1.bf16.msra.mxu0 0
    %288 = vmatprep.subr.bf16.mxu0 0
    %289 = vmatpush1.bf16.msra.mxu0 0
    %290 = vmatprep.subr.bf16.mxu0 0
    %291 = vmatpush1.bf16.msra.mxu0 0
    %292 = vmatprep.subr.bf16.mxu0 0
    %293 = vmatpush1.bf16.msra.mxu0 0
    %294 = vmatprep.subr.bf16.mxu0 0
    %295 = vmatpush1.bf16.msra.mxu0 0
    %296 = vmatprep.subr.bf16.mxu0 0
    %297 = vmatpush1.bf16.msra.mxu0 0
    %298 = vmatprep.subr.bf16.mxu0 0
    %299 = vmatpush1.bf16.msra.mxu0 0
    %300 = vmatprep.subr.bf16.mxu0 0
    %301 = vmatpush1.bf16.msra.mxu0 0
    %302 = vmatprep.subr.bf16.mxu0 0
    %303 = vmatpush1.bf16.msra.mxu0 0
    %304 = vmatprep.mubr.bf16.mxu0 0
    %305 = vmatmul.mubr.bf16.gmra.mrb[0].mxu0 %v270
    %v306 = vpop.f32.mrb[0].mxu0
    %v307 = vadd.f32 0.0, %v306
    %v308 = vpop.f32.mrb[0].mxu0
    %v309 = vpop.f32.mrb[0].mxu0
    %v310 = vadd.f32 0.0, %v309
    %v311 = vpop.f32.mrb[0].mxu0
    %312 = vdwg.mxu0
    %v313 = vmul.f32 %v307, 1.442695
    %v314 = vpow.pop %v313
    %v315 = vmul.f32 %v310, 1.442695
    %v316 = vpow.pop %v315
    %318 = vset.pattern.permute.xlu0 0
    %319 = vperm.xlu0 %318, %v314
    %v320 = vpop.permute.xlu0 %319
    %323 = vset.pattern.permute.xlu0 0
    %324 = vperm.xlu0 %323, %v316
    %v325 = vpop.permute.xlu0 %324
    %v327 = vmul.f32 %v320, %v130
    %v328 = vmul.f32 %v325, %v131
    %vm329 = vcmask 23552
    %v330 = vsel %vm329, %v327, 0.0
    %v331 = vrot.slane %v330, 4
    %v332 = vadd.f32 %v330, %v331
    %v333 = vrot.slane %v332, 2
    %v334 = vadd.f32 %v332, %v333
    %v335 = vrot.slane %v334, 1
    %v336 = vadd.f32 %v334, %v335
    %v337 = vsel %vm329, %v328, 0.0
    %v338 = vrot.slane %v337, 4
    %v339 = vadd.f32 %v337, %v338
    %v340 = vrot.slane %v339, 2
    %v341 = vadd.f32 %v339, %v340
    %v342 = vrot.slane %v341, 1
    %v343 = vadd.f32 %v341, %v342
    %v344 = vrcp.pop %v336
    %v345 = vrcp.pop %v343
    %348 = vrot.lane.b32.xlu0 %v344, 126
    %v349 = vpop.permute.xlu0 %348
    %350 = vrot.lane.b32.xlu0 %v345, 126
    %v351 = vpop.permute.xlu0 %350
    %v354 = vmul.f32 %v336, %v349
    %v355 = vmul.f32 %v343, %v351
    %v357 = vrot.slane %v138, 1
    %v360 = vadd.f32 %v354, %v138
    %v361 = vadd.f32 %v355, %v357
    %363 = vset.pattern.permute.xlu0 0
    %364 = vperm.xlu0 %363, %v360
    %v365 = vpop.permute.xlu0 %364
    %368 = vset.pattern.permute.xlu0 0
    %369 = vperm.xlu0 %368, %v361
    %v370 = vpop.permute.xlu0 %369
    %v372 = vlaneseq
    %v373 = vshrl.u32 %v372, 7
    %v374 = vsub.s32 1, %v373
    %v375 = vrot.slane %v46, %v374
    %v376 = vmul.f32 %v365, %v375
    %v377 = vmul.f32 %v370, %v375
    %v379 = vrot.slane %v219, 1
    %v382 = vadd.f32 %v376, %v219
    %v383 = vadd.f32 %v377, %v379
    %v384 = vlaneseq
    %v385 = vshrl.u32 %v384, 7
    %v386 = vsub.s32 2, %v385
    %v387 = vrot.slane %v46, %v386
    %v388 = vadd.f32 %v382, %v387
    %v389 = vadd.f32 %v383, %v387
    %v390 = vxor.u32 %v388, 2147483648
    %v391 = vxor.u32 %v389, 2147483648
    %v392 = vmul.f32 %v390, 1.442695
    %v393 = vpow.pop %v392
    %v394 = vmul.f32 %v391, 1.442695
    %v395 = vpow.pop %v394
    %v396 = vadd.f32 %v393, 1.0
    %v397 = vadd.f32 %v395, 1.0
    %v398 = vrcp.pop %v396
    %v399 = vmul.f32 1.0, %v398
    %v400 = vrcp.pop %v397
    %v401 = vmul.f32 1.0, %v400
    %v402 = vtanh.pop %v388
    %v403 = vtanh.pop %v389
    %v404 = vmul.f32 %v399, 0.0
    %v405 = vmul.f32 %v401, 0.0
    %408 = vrot.lane.b32.xlu0 %v402, 64
    %v409 = vpop.permute.xlu0 %408
    %410 = vrot.lane.b32.xlu0 %v403, 64
    %v411 = vpop.permute.xlu0 %410
    %v414 = vmul.f32 %v399, %v409
    %v415 = vmul.f32 %v401, %v411
    %418 = vrot.lane.b32.xlu0 %v414, 32
    %v419 = vpop.permute.xlu0 %418
    %420 = vrot.lane.b32.xlu0 %v415, 32
    %v421 = vpop.permute.xlu0 %420
    %v424 = vadd.f32 %v404, %v419
    %v425 = vadd.f32 %v405, %v421
    %v426 = vtanh.pop %v424
    %v427 = vtanh.pop %v425
    %430 = vrot.lane.b32.xlu0 %v426, 64
    %v431 = vpop.permute.xlu0 %430
    %432 = vrot.lane.b32.xlu0 %v427, 64
    %v433 = vpop.permute.xlu0 %432
    %v436 = vmul.f32 %v399, %v431
    %v437 = vmul.f32 %v401, %v433
    %v440 = vrot.slane %v437, 7
    %vm441 = vcmask 1041409
    %v442 = vsel %vm441, %v440, %v436
    %443 = vrot.lane.b32.xlu0 %v442, 32
    %v444 = vpop.permute.xlu0 %443
    %v448 = vrot.slane %v425, 7
    %v449 = vsel %vm441, %v448, %v424
    %v451 = vsel %vm70, %v444, %v449
    %v452 = vpack.c.bf16 %v451, %v451
    %v454 = vsel %vm180, %v452, 0
    %456 = vmatprep.subr.bf16.mxu0 %v165
    %457 = vmatpush1.bf16.msra.mxu0 %v164
    %458 = vmatprep.subr.bf16.mxu0 %v167
    %459 = vmatpush1.bf16.msra.mxu0 %v166
    %460 = vmatprep.subr.bf16.mxu0 %v169
    %461 = vmatpush1.bf16.msra.mxu0 %v168
    %462 = vmatprep.subr.bf16.mxu0 %v171
    %463 = vmatpush1.bf16.msra.mxu0 %v170
    %464 = vmatprep.subr.bf16.mxu0 0
    %465 = vmatpush1.bf16.msra.mxu0 0
    %466 = vmatprep.subr.bf16.mxu0 0
    %467 = vmatpush1.bf16.msra.mxu0 0
    %468 = vmatprep.subr.bf16.mxu0 0
    %469 = vmatpush1.bf16.msra.mxu0 0
    %470 = vmatprep.subr.bf16.mxu0 0
    %471 = vmatpush1.bf16.msra.mxu0 0
    %472 = vmatprep.subr.bf16.mxu0 0
    %473 = vmatpush1.bf16.msra.mxu0 0
    %474 = vmatprep.subr.bf16.mxu0 0
    %475 = vmatpush1.bf16.msra.mxu0 0
    %476 = vmatprep.subr.bf16.mxu0 0
    %477 = vmatpush1.bf16.msra.mxu0 0
    %478 = vmatprep.subr.bf16.mxu0 0
    %479 = vmatpush1.bf16.msra.mxu0 0
    %480 = vmatprep.subr.bf16.mxu0 0
    %481 = vmatpush1.bf16.msra.mxu0 0
    %482 = vmatprep.subr.bf16.mxu0 0
    %483 = vmatpush1.bf16.msra.mxu0 0
    %484 = vmatprep.subr.bf16.mxu0 0
    %485 = vmatpush1.bf16.msra.mxu0 0
    %486 = vmatprep.subr.bf16.mxu0 0
    %487 = vmatpush1.bf16.msra.mxu0 0
    %488 = vmatprep.mubr.bf16.mxu0 0
    %489 = vmatmul.mubr.bf16.gmra.mrb[0].mxu0 %v454
    %v490 = vpop.f32.mrb[0].mxu0
    %v491 = vadd.f32 0.0, %v490
    %v492 = vpop.f32.mrb[0].mxu0
    %v493 = vadd.f32 0.0, %v492
    %v494 = vpop.f32.mrb[0].mxu0
    %v495 = vpop.f32.mrb[0].mxu0
    %496 = vdwg.mxu0
    %v499 = vunpack.c.l.s4 1966171168
    %v500 = vunpack.c.0.s8 %v499
    %v501 = vlaneseq
    %v502 = vshrl.u32 %v501, 7
    %v503 = vsub.s32 %v500, %v502
    %v504 = vrot.slane %v493, %v503
    %v505 = vcombine.high %v504, %v504
    %v507 = vunpack.c.l.s4 1966171168
    %v508 = vunpack.c.0.s8 %v507
    %v509 = vlaneseq
    %v510 = vshrl.u32 %v509, 7
    %v511 = vsub.s32 %v508, %v510
    %v512 = vrot.slane %v504, %v511
    %v514 = vunpack.c.l.s4 1966171168
    %v515 = vunpack.c.0.s8 %v514
    %v516 = vlaneseq
    %v517 = vshrl.u32 %v516, 7
    %v518 = vsub.s32 %v515, %v517
    %v519 = vrot.slane %v505, %v518
    %v520 = vlaneseq
    %v521 = vshrl.u32 %v520, 7
    %v522 = vsub.s32 0, %v521
    %v523 = vrot.slane %v512, %v522
    %v524 = vlaneseq
    %v525 = vshrl.u32 %v524, 7
    %v526 = vsub.s32 0, %v525
    %v527 = vrot.slane %v519, %v526
    %v530 = vadd.f32 %v523, %v119
    %v531 = vadd.f32 %v527, %v120
    %v532 = vtanh.pop %v530
    %v533 = vtanh.pop %v531
    %v534 = vpack.c.bf16 %v533, %v532
    %v536 = vsel %vm70, %v534, 0
    %538 = vmatprep.subr.bf16.mxu0 0
    %539 = vmatpush1.bf16.msra.mxu0 %v264
    %540 = vmatprep.subr.bf16.mxu0 0
    %541 = vmatpush1.bf16.msra.mxu0 %v266
    %542 = vmatprep.subr.bf16.mxu0 0
    %543 = vmatpush1.bf16.msra.mxu0 0
    %544 = vmatprep.subr.bf16.mxu0 0
    %545 = vmatpush1.bf16.msra.mxu0 0
    %546 = vmatprep.subr.bf16.mxu0 0
    %547 = vmatpush1.bf16.msra.mxu0 0
    %548 = vmatprep.subr.bf16.mxu0 0
    %549 = vmatpush1.bf16.msra.mxu0 0
    %550 = vmatprep.subr.bf16.mxu0 0
    %551 = vmatpush1.bf16.msra.mxu0 0
    %552 = vmatprep.subr.bf16.mxu0 0
    %553 = vmatpush1.bf16.msra.mxu0 0
    %554 = vmatprep.subr.bf16.mxu0 0
    %555 = vmatpush1.bf16.msra.mxu0 0
    %556 = vmatprep.subr.bf16.mxu0 0
    %557 = vmatpush1.bf16.msra.mxu0 0
    %558 = vmatprep.subr.bf16.mxu0 0
    %559 = vmatpush1.bf16.msra.mxu0 0
    %560 = vmatprep.subr.bf16.mxu0 0
    %561 = vmatpush1.bf16.msra.mxu0 0
    %562 = vmatprep.subr.bf16.mxu0 0
    %563 = vmatpush1.bf16.msra.mxu0 0
    %564 = vmatprep.subr.bf16.mxu0 0
    %565 = vmatpush1.bf16.msra.mxu0 0
    %566 = vmatprep.subr.bf16.mxu0 0
    %567 = vmatpush1.bf16.msra.mxu0 0
    %568 = vmatprep.subr.bf16.mxu0 0
    %569 = vmatpush1.bf16.msra.mxu0 0
    %570 = vmatprep.mubr.bf16.mxu0 0
    %571 = vmatmul.mubr.bf16.gmra.mrb[0].mxu0 %v536
    %v572 = vpop.f32.mrb[0].mxu0
    %v573 = vadd.f32 0.0, %v572
    %v574 = vpop.f32.mrb[0].mxu0
    %v575 = vpop.f32.mrb[0].mxu0
    %v576 = vadd.f32 0.0, %v575
    %v577 = vpop.f32.mrb[0].mxu0
    %578 = vdwg.mxu0
    %v579 = vmul.f32 %v573, 1.442695
    %v580 = vpow.pop %v579
    %v581 = vmul.f32 %v576, 1.442695
    %v582 = vpow.pop %v581
    %584 = vset.pattern.permute.xlu0 0
    %585 = vperm.xlu0 %584, %v580
    %v586 = vpop.permute.xlu0 %585
    %589 = vset.pattern.permute.xlu0 0
    %590 = vperm.xlu0 %589, %v582
    %v591 = vpop.permute.xlu0 %590
    %v593 = vmul.f32 %v586, %v130
    %v594 = vmul.f32 %v591, %v131
    %v595 = vsel %vm329, %v593, 0.0
    %v596 = vrot.slane %v595, 4
    %v597 = vadd.f32 %v595, %v596
    %v598 = vrot.slane %v597, 2
    %v599 = vadd.f32 %v597, %v598
    %v600 = vrot.slane %v599, 1
    %v601 = vadd.f32 %v599, %v600
    %v602 = vsel %vm329, %v594, 0.0
    %v603 = vrot.slane %v602, 4
    %v604 = vadd.f32 %v602, %v603
    %v605 = vrot.slane %v604, 2
    %v606 = vadd.f32 %v604, %v605
    %v607 = vrot.slane %v606, 1
    %v608 = vadd.f32 %v606, %v607
    %v609 = vrcp.pop %v601
    %v610 = vrcp.pop %v608
    %613 = vrot.lane.b32.xlu0 %v609, 126
    %v614 = vpop.permute.xlu0 %613
    %615 = vrot.lane.b32.xlu0 %v610, 126
    %v616 = vpop.permute.xlu0 %615
    %v619 = vmul.f32 %v601, %v614
    %v620 = vmul.f32 %v608, %v616
    %621 = vrot.lane.b32.xlu0 %v138, 127
    %v622 = vpop.permute.xlu0 %621
    %623 = vrot.lane.b32.xlu0 %v357, 127
    %v624 = vpop.permute.xlu0 %623
    %v627 = vadd.f32 %v619, %v622
    %v628 = vadd.f32 %v620, %v624
    %630 = vset.pattern.permute.xlu0 0
    %631 = vperm.xlu0 %630, %v627
    %v632 = vpop.permute.xlu0 %631
    %635 = vset.pattern.permute.xlu0 0
    %636 = vperm.xlu0 %635, %v628
    %v637 = vpop.permute.xlu0 %636
    %v639 = vmul.f32 %v632, %v375
    %v640 = vmul.f32 %v637, %v375
    %v642 = vrot.slane %v491, 1
    %v645 = vadd.f32 %v639, %v491
    %v646 = vadd.f32 %v640, %v642
    %v647 = vadd.f32 %v645, %v387
    %v648 = vadd.f32 %v646, %v387
    %v649 = vxor.u32 %v647, 2147483648
    %v650 = vxor.u32 %v648, 2147483648
    %v651 = vmul.f32 %v649, 1.442695
    %v652 = vpow.pop %v651
    %v653 = vmul.f32 %v650, 1.442695
    %v654 = vpow.pop %v653
    %v655 = vadd.f32 %v652, 1.0
    %v656 = vadd.f32 %v654, 1.0
    %v657 = vrcp.pop %v655
    %v658 = vmul.f32 1.0, %v657
    %v659 = vrcp.pop %v656
    %v660 = vmul.f32 1.0, %v659
    %v661 = vtanh.pop %v647
    %v662 = vtanh.pop %v648
    %v663 = vmul.f32 %v658, %v424
    %v664 = vmul.f32 %v660, %v425
    %667 = vrot.lane.b32.xlu0 %v661, 64
    %v668 = vpop.permute.xlu0 %667
    %669 = vrot.lane.b32.xlu0 %v662, 64
    %v670 = vpop.permute.xlu0 %669
    %v673 = vmul.f32 %v658, %v668
    %v674 = vmul.f32 %v660, %v670
    %677 = vrot.lane.b32.xlu0 %v673, 32
    %v678 = vpop.permute.xlu0 %677
    %679 = vrot.lane.b32.xlu0 %v674, 32
    %v680 = vpop.permute.xlu0 %679
    %v683 = vadd.f32 %v663, %v678
    %v684 = vadd.f32 %v664, %v680
    %v685 = vtanh.pop %v683
    %v686 = vtanh.pop %v684
    %689 = vrot.lane.b32.xlu0 %v685, 64
    %v690 = vpop.permute.xlu0 %689
    %691 = vrot.lane.b32.xlu0 %v686, 64
    %v692 = vpop.permute.xlu0 %691
    %v695 = vmul.f32 %v658, %v690
    %v696 = vmul.f32 %v660, %v692
    %v699 = vrot.slane %v696, 7
    %v700 = vsel %vm441, %v699, %v695
    %701 = vrot.lane.b32.xlu0 %v700, 32
    %v702 = vpop.permute.xlu0 %701
    %v706 = vrot.slane %v684, 7
    %v707 = vsel %vm441, %v706, %v683
    %v709 = vsel %vm70, %v702, %v707
    %v710 = vpack.c.bf16 %v709, %v709
    %v712 = vsel %vm180, %v710, 0
    %714 = vmatprep.subr.bf16.mxu0 %v165
    %715 = vmatpush1.bf16.msra.mxu0 %v164
    %716 = vmatprep.subr.bf16.mxu0 %v167
    %717 = vmatpush1.bf16.msra.mxu0 %v166
    %718 = vmatprep.subr.bf16.mxu0 %v169
    %719 = vmatpush1.bf16.msra.mxu0 %v168
    %720 = vmatprep.subr.bf16.mxu0 %v171
    %721 = vmatpush1.bf16.msra.mxu0 %v170
    %722 = vmatprep.subr.bf16.mxu0 0
    %723 = vmatpush1.bf16.msra.mxu0 0
    %724 = vmatprep.subr.bf16.mxu0 0
    %725 = vmatpush1.bf16.msra.mxu0 0
    %726 = vmatprep.subr.bf16.mxu0 0
    %727 = vmatpush1.bf16.msra.mxu0 0
    %728 = vmatprep.subr.bf16.mxu0 0
    %729 = vmatpush1.bf16.msra.mxu0 0
    %730 = vmatprep.subr.bf16.mxu0 0
    %731 = vmatpush1.bf16.msra.mxu0 0
    %732 = vmatprep.subr.bf16.mxu0 0
    %733 = vmatpush1.bf16.msra.mxu0 0
    %734 = vmatprep.subr.bf16.mxu0 0
    %735 = vmatpush1.bf16.msra.mxu0 0
    %736 = vmatprep.subr.bf16.mxu0 0
    %737 = vmatpush1.bf16.msra.mxu0 0
    %738 = vmatprep.subr.bf16.mxu0 0
    %739 = vmatpush1.bf16.msra.mxu0 0
    %740 = vmatprep.subr.bf16.mxu0 0
    %741 = vmatpush1.bf16.msra.mxu0 0
    %742 = vmatprep.subr.bf16.mxu0 0
    %743 = vmatpush1.bf16.msra.mxu0 0
    %744 = vmatprep.subr.bf16.mxu0 0
    %745 = vmatpush1.bf16.msra.mxu0 0
    %746 = vmatprep.mubr.bf16.mxu0 0
    %747 = vmatmul.mubr.bf16.gmra.mrb[0].mxu0 %v712
    %v748 = vpop.f32.mrb[0].mxu0
    %v749 = vadd.f32 0.0, %v748
    %v750 = vpop.f32.mrb[0].mxu0
    %v751 = vadd.f32 0.0, %v750
    %v752 = vpop.f32.mrb[0].mxu0
    %v753 = vpop.f32.mrb[0].mxu0
    %754 = vdwg.mxu0
    %v757 = vunpack.c.l.s4 1966171168
    %v758 = vunpack.c.0.s8 %v757
    %v759 = vlaneseq
    %v760 = vshrl.u32 %v759, 7
    %v761 = vsub.s32 %v758, %v760
    %v762 = vrot.slane %v751, %v761
    %v763 = vcombine.high %v762, %v762
    %v765 = vunpack.c.l.s4 1966171168
    %v766 = vunpack.c.0.s8 %v765
    %v767 = vlaneseq
    %v768 = vshrl.u32 %v767, 7
    %v769 = vsub.s32 %v766, %v768
    %v770 = vrot.slane %v762, %v769
    %v772 = vunpack.c.l.s4 1966171168
    %v773 = vunpack.c.0.s8 %v772
    %v774 = vlaneseq
    %v775 = vshrl.u32 %v774, 7
    %v776 = vsub.s32 %v773, %v775
    %v777 = vrot.slane %v763, %v776
    %v778 = vlaneseq
    %v779 = vshrl.u32 %v778, 7
    %v780 = vsub.s32 0, %v779
    %v781 = vrot.slane %v770, %v780
    %v782 = vlaneseq
    %v783 = vshrl.u32 %v782, 7
    %v784 = vsub.s32 0, %v783
    %v785 = vrot.slane %v777, %v784
    %v788 = vadd.f32 %v781, %v119
    %v789 = vadd.f32 %v785, %v120
    %v790 = vtanh.pop %v788
    %v791 = vtanh.pop %v789
    %v792 = vpack.c.bf16 %v791, %v790
    %v794 = vsel %vm70, %v792, 0
    %796 = vmatprep.subr.bf16.mxu0 0
    %797 = vmatpush1.bf16.msra.mxu0 %v264
    %798 = vmatprep.subr.bf16.mxu0 0
    %799 = vmatpush1.bf16.msra.mxu0 %v266
    %800 = vmatprep.subr.bf16.mxu0 0
    %801 = vmatpush1.bf16.msra.mxu0 0
    %802 = vmatprep.subr.bf16.mxu0 0
    %803 = vmatpush1.bf16.msra.mxu0 0
    %804 = vmatprep.subr.bf16.mxu0 0
    %805 = vmatpush1.bf16.msra.mxu0 0
    %806 = vmatprep.subr.bf16.mxu0 0
    %807 = vmatpush1.bf16.msra.mxu0 0
    %808 = vmatprep.subr.bf16.mxu0 0
    %809 = vmatpush1.bf16.msra.mxu0 0
    %810 = vmatprep.subr.bf16.mxu0 0
    %811 = vmatpush1.bf16.msra.mxu0 0
    %812 = vmatprep.subr.bf16.mxu0 0
    %813 = vmatpush1.bf16.msra.mxu0 0
    %814 = vmatprep.subr.bf16.mxu0 0
    %815 = vmatpush1.bf16.msra.mxu0 0
    %816 = vmatprep.subr.bf16.mxu0 0
    %817 = vmatpush1.bf16.msra.mxu0 0
    %818 = vmatprep.subr.bf16.mxu0 0
    %819 = vmatpush1.bf16.msra.mxu0 0
    %820 = vmatprep.subr.bf16.mxu0 0
    %821 = vmatpush1.bf16.msra.mxu0 0
    %822 = vmatprep.subr.bf16.mxu0 0
    %823 = vmatpush1.bf16.msra.mxu0 0
    %824 = vmatprep.subr.bf16.mxu0 0
    %825 = vmatpush1.bf16.msra.mxu0 0
    %826 = vmatprep.subr.bf16.mxu0 0
    %827 = vmatpush1.bf16.msra.mxu0 0
    %828 = vmatprep.mubr.bf16.mxu0 0
    %829 = vmatmul.mubr.bf16.gmra.mrb[0].mxu0 %v794
    %v830 = vpop.f32.mrb[0].mxu0
    %v831 = vadd.f32 0.0, %v830
    %v832 = vpop.f32.mrb[0].mxu0
    %v833 = vpop.f32.mrb[0].mxu0
    %v834 = vadd.f32 0.0, %v833
    %v835 = vpop.f32.mrb[0].mxu0
    %836 = vdwg.mxu0
    %v837 = vmul.f32 %v831, 1.442695
    %v838 = vpow.pop %v837
    %v839 = vmul.f32 %v834, 1.442695
    %v840 = vpow.pop %v839
    %842 = vset.pattern.permute.xlu0 0
    %843 = vperm.xlu0 %842, %v838
    %v844 = vpop.permute.xlu0 %843
    %847 = vset.pattern.permute.xlu0 0
    %848 = vperm.xlu0 %847, %v840
    %v849 = vpop.permute.xlu0 %848
    %v851 = vmul.f32 %v844, %v130
    %v852 = vmul.f32 %v849, %v131
    %v853 = vsel %vm329, %v851, 0.0
    %v854 = vrot.slane %v853, 4
    %v855 = vadd.f32 %v853, %v854
    %v856 = vrot.slane %v855, 2
    %v857 = vadd.f32 %v855, %v856
    %v858 = vrot.slane %v857, 1
    %v859 = vadd.f32 %v857, %v858
    %v860 = vsel %vm329, %v852, 0.0
    %v861 = vrot.slane %v860, 4
    %v862 = vadd.f32 %v860, %v861
    %v863 = vrot.slane %v862, 2
    %v864 = vadd.f32 %v862, %v863
    %v865 = vrot.slane %v864, 1
    %v866 = vadd.f32 %v864, %v865
    %v867 = vrcp.pop %v859
    %v868 = vrcp.pop %v866
    %871 = vrot.lane.b32.xlu0 %v867, 126
    %v872 = vpop.permute.xlu0 %871
    %873 = vrot.lane.b32.xlu0 %v868, 126
    %v874 = vpop.permute.xlu0 %873
    %v877 = vmul.f32 %v859, %v872
    %v878 = vmul.f32 %v866, %v874
    %879 = vrot.lane.b32.xlu0 %v138, 126
    %v880 = vpop.permute.xlu0 %879
    %881 = vrot.lane.b32.xlu0 %v357, 126
    %v882 = vpop.permute.xlu0 %881
    %v885 = vadd.f32 %v877, %v880
    %v886 = vadd.f32 %v878, %v882
    %888 = vset.pattern.permute.xlu0 0
    %889 = vperm.xlu0 %888, %v885
    %v890 = vpop.permute.xlu0 %889
    %893 = vset.pattern.permute.xlu0 0
    %894 = vperm.xlu0 %893, %v886
    %v895 = vpop.permute.xlu0 %894
    %v897 = vmul.f32 %v890, %v375
    %v898 = vmul.f32 %v895, %v375
    %v900 = vrot.slane %v749, 1
    %v903 = vadd.f32 %v897, %v749
    %v904 = vadd.f32 %v898, %v900
    %v905 = vadd.f32 %v903, %v387
    %v906 = vadd.f32 %v904, %v387
    %v907 = vxor.u32 %v905, 2147483648
    %v908 = vxor.u32 %v906, 2147483648
    %v909 = vmul.f32 %v907, 1.442695
    %v910 = vpow.pop %v909
    %v911 = vmul.f32 %v908, 1.442695
    %v912 = vpow.pop %v911
    %v913 = vadd.f32 %v910, 1.0
    %v914 = vadd.f32 %v912, 1.0
    %v915 = vrcp.pop %v913
    %v916 = vmul.f32 1.0, %v915
    %v917 = vrcp.pop %v914
    %v918 = vmul.f32 1.0, %v917
    %v919 = vtanh.pop %v905
    %v920 = vtanh.pop %v906
    %v921 = vmul.f32 %v916, %v683
    %v922 = vmul.f32 %v918, %v684
    %925 = vrot.lane.b32.xlu0 %v919, 64
    %v926 = vpop.permute.xlu0 %925
    %927 = vrot.lane.b32.xlu0 %v920, 64
    %v928 = vpop.permute.xlu0 %927
    %v931 = vmul.f32 %v916, %v926
    %v932 = vmul.f32 %v918, %v928
    %935 = vrot.lane.b32.xlu0 %v931, 32
    %v936 = vpop.permute.xlu0 %935
    %937 = vrot.lane.b32.xlu0 %v932, 32
    %v938 = vpop.permute.xlu0 %937
    %v941 = vadd.f32 %v921, %v936
    %v942 = vadd.f32 %v922, %v938
    %v943 = vtanh.pop %v941
    %v944 = vtanh.pop %v942
    %947 = vrot.lane.b32.xlu0 %v943, 64
    %v948 = vpop.permute.xlu0 %947
    %949 = vrot.lane.b32.xlu0 %v944, 64
    %v950 = vpop.permute.xlu0 %949
    %v953 = vmul.f32 %v916, %v948
    %v954 = vmul.f32 %v918, %v950
    %v957 = vrot.slane %v954, 7
    %v958 = vsel %vm441, %v957, %v953
    %959 = vrot.lane.b32.xlu0 %v958, 32
    %v960 = vpop.permute.xlu0 %959
    %v964 = vrot.slane %v942, 7
    %v965 = vsel %vm441, %v964, %v941
    %v967 = vsel %vm70, %v960, %v965
    %v968 = vpack.c.bf16 %v967, %v967
    %v970 = vsel %vm180, %v968, 0
    %972 = vmatprep.subr.bf16.mxu0 %v165
    %973 = vmatpush1.bf16.msra.mxu0 %v164
    %974 = vmatprep.subr.bf16.mxu0 %v167
    %975 = vmatpush1.bf16.msra.mxu0 %v166
    %976 = vmatprep.subr.bf16.mxu0 %v169
    %977 = vmatpush1.bf16.msra.mxu0 %v168
    %978 = vmatprep.subr.bf16.mxu0 %v171
    %979 = vmatpush1.bf16.msra.mxu0 %v170
    %980 = vmatprep.subr.bf16.mxu0 0
    %981 = vmatpush1.bf16.msra.mxu0 0
    %982 = vmatprep.subr.bf16.mxu0 0
    %983 = vmatpush1.bf16.msra.mxu0 0
    %984 = vmatprep.subr.bf16.mxu0 0
    %985 = vmatpush1.bf16.msra.mxu0 0
    %986 = vmatprep.subr.bf16.mxu0 0
    %987 = vmatpush1.bf16.msra.mxu0 0
    %988 = vmatprep.subr.bf16.mxu0 0
    %989 = vmatpush1.bf16.msra.mxu0 0
    %990 = vmatprep.subr.bf16.mxu0 0
    %991 = vmatpush1.bf16.msra.mxu0 0
    %992 = vmatprep.subr.bf16.mxu0 0
    %993 = vmatpush1.bf16.msra.mxu0 0
    %994 = vmatprep.subr.bf16.mxu0 0
    %995 = vmatpush1.bf16.msra.mxu0 0
    %996 = vmatprep.subr.bf16.mxu0 0
    %997 = vmatpush1.bf16.msra.mxu0 0
    %998 = vmatprep.subr.bf16.mxu0 0
    %999 = vmatpush1.bf16.msra.mxu0 0
    %1000 = vmatprep.subr.bf16.mxu0 0
    %1001 = vmatpush1.bf16.msra.mxu0 0
    %1002 = vmatprep.subr.bf16.mxu0 0
    %1003 = vmatpush1.bf16.msra.mxu0 0
    %1004 = vmatprep.mubr.bf16.mxu0 0
    %1005 = vmatmul.mubr.bf16.gmra.mrb[0].mxu0 %v970
    %v1006 = vpop.f32.mrb[0].mxu0
    %v1007 = vadd.f32 0.0, %v1006
    %v1008 = vpop.f32.mrb[0].mxu0
    %v1009 = vadd.f32 0.0, %v1008
    %v1010 = vpop.f32.mrb[0].mxu0
    %v1011 = vpop.f32.mrb[0].mxu0
    %1012 = vdwg.mxu0
    %v1015 = vunpack.c.l.s4 1966171168
    %v1016 = vunpack.c.0.s8 %v1015
    %v1017 = vlaneseq
    %v1018 = vshrl.u32 %v1017, 7
    %v1019 = vsub.s32 %v1016, %v1018
    %v1020 = vrot.slane %v1009, %v1019
    %v1021 = vcombine.high %v1020, %v1020
    %v1023 = vunpack.c.l.s4 1966171168
    %v1024 = vunpack.c.0.s8 %v1023
    %v1025 = vlaneseq
    %v1026 = vshrl.u32 %v1025, 7
    %v1027 = vsub.s32 %v1024, %v1026
    %v1028 = vrot.slane %v1020, %v1027
    %v1030 = vunpack.c.l.s4 1966171168
    %v1031 = vunpack.c.0.s8 %v1030
    %v1032 = vlaneseq
    %v1033 = vshrl.u32 %v1032, 7
    %v1034 = vsub.s32 %v1031, %v1033
    %v1035 = vrot.slane %v1021, %v1034
    %v1036 = vlaneseq
    %v1037 = vshrl.u32 %v1036, 7
    %v1038 = vsub.s32 0, %v1037
    %v1039 = vrot.slane %v1028, %v1038
    %v1040 = vlaneseq
    %v1041 = vshrl.u32 %v1040, 7
    %v1042 = vsub.s32 0, %v1041
    %v1043 = vrot.slane %v1035, %v1042
    %v1046 = vadd.f32 %v1039, %v119
    %v1047 = vadd.f32 %v1043, %v120
    %v1048 = vtanh.pop %v1046
    %v1049 = vtanh.pop %v1047
    %v1050 = vpack.c.bf16 %v1049, %v1048
    %v1052 = vsel %vm70, %v1050, 0
    %1054 = vmatprep.subr.bf16.mxu0 0
    %1055 = vmatpush1.bf16.msra.mxu0 %v264
    %1056 = vmatprep.subr.bf16.mxu0 0
    %1057 = vmatpush1.bf16.msra.mxu0 %v266
    %1058 = vmatprep.subr.bf16.mxu0 0
    %1059 = vmatpush1.bf16.msra.mxu0 0
    %1060 = vmatprep.subr.bf16.mxu0 0
    %1061 = vmatpush1.bf16.msra.mxu0 0
    %1062 = vmatprep.subr.bf16.mxu0 0
    %1063 = vmatpush1.bf16.msra.mxu0 0
    %1064 = vmatprep.subr.bf16.mxu0 0
    %1065 = vmatpush1.bf16.msra.mxu0 0
    %1066 = vmatprep.subr.bf16.mxu0 0
    %1067 = vmatpush1.bf16.msra.mxu0 0
    %1068 = vmatprep.subr.bf16.mxu0 0
    %1069 = vmatpush1.bf16.msra.mxu0 0
    %1070 = vmatprep.subr.bf16.mxu0 0
    %1071 = vmatpush1.bf16.msra.mxu0 0
    %1072 = vmatprep.subr.bf16.mxu0 0
    %1073 = vmatpush1.bf16.msra.mxu0 0
    %1074 = vmatprep.subr.bf16.mxu0 0
    %1075 = vmatpush1.bf16.msra.mxu0 0
    %1076 = vmatprep.subr.bf16.mxu0 0
    %1077 = vmatpush1.bf16.msra.mxu0 0
    %1078 = vmatprep.subr.bf16.mxu0 0
    %1079 = vmatpush1.bf16.msra.mxu0 0
    %1080 = vmatprep.subr.bf16.mxu0 0
    %1081 = vmatpush1.bf16.msra.mxu0 0
    %1082 = vmatprep.subr.bf16.mxu0 0
    %1083 = vmatpush1.bf16.msra.mxu0 0
    %1084 = vmatprep.subr.bf16.mxu0 0
    %1085 = vmatpush1.bf16.msra.mxu0 0
    %1086 = vmatprep.mubr.bf16.mxu0 0
    %1087 = vmatmul.mubr.bf16.gmra.mrb[0].mxu0 %v1052
    %v1088 = vpop.f32.mrb[0].mxu0
    %v1089 = vadd.f32 0.0, %v1088
    %v1090 = vpop.f32.mrb[0].mxu0
    %v1091 = vpop.f32.mrb[0].mxu0
    %v1092 = vadd.f32 0.0, %v1091
    %v1093 = vpop.f32.mrb[0].mxu0
    %1094 = vdwg.mxu0
    %v1095 = vmul.f32 %v1089, 1.442695
    %v1096 = vpow.pop %v1095
    %v1097 = vmul.f32 %v1092, 1.442695
    %v1098 = vpow.pop %v1097
    %1100 = vset.pattern.permute.xlu0 0
    %1101 = vperm.xlu0 %1100, %v1096
    %v1102 = vpop.permute.xlu0 %1101
    %1105 = vset.pattern.permute.xlu0 0
    %1106 = vperm.xlu0 %1105, %v1098
    %v1107 = vpop.permute.xlu0 %1106
    %v1109 = vmul.f32 %v1102, %v130
    %v1110 = vmul.f32 %v1107, %v131
    %v1111 = vsel %vm329, %v1109, 0.0
    %v1112 = vrot.slane %v1111, 4
    %v1113 = vadd.f32 %v1111, %v1112
    %v1114 = vrot.slane %v1113, 2
    %v1115 = vadd.f32 %v1113, %v1114
    %v1116 = vrot.slane %v1115, 1
    %v1117 = vadd.f32 %v1115, %v1116
    %v1118 = vsel %vm329, %v1110, 0.0
    %v1119 = vrot.slane %v1118, 4
    %v1120 = vadd.f32 %v1118, %v1119
    %v1121 = vrot.slane %v1120, 2
    %v1122 = vadd.f32 %v1120, %v1121
    %v1123 = vrot.slane %v1122, 1
    %v1124 = vadd.f32 %v1122, %v1123
    %v1125 = vrcp.pop %v1117
    %v1126 = vrcp.pop %v1124
    %1129 = vrot.lane.b32.xlu0 %v1125, 126
    %v1130 = vpop.permute.xlu0 %1129
    %1131 = vrot.lane.b32.xlu0 %v1126, 126
    %v1132 = vpop.permute.xlu0 %1131
    %v1135 = vmul.f32 %v1117, %v1130
    %v1136 = vmul.f32 %v1124, %v1132
    %1137 = vrot.lane.b32.xlu0 %v138, 125
    %v1138 = vpop.permute.xlu0 %1137
    %1139 = vrot.lane.b32.xlu0 %v357, 125
    %v1140 = vpop.permute.xlu0 %1139
    %v1143 = vadd.f32 %v1135, %v1138
    %v1144 = vadd.f32 %v1136, %v1140
    %1146 = vset.pattern.permute.xlu0 0
    %1147 = vperm.xlu0 %1146, %v1143
    %v1148 = vpop.permute.xlu0 %1147
    %1151 = vset.pattern.permute.xlu0 0
    %1152 = vperm.xlu0 %1151, %v1144
    %v1153 = vpop.permute.xlu0 %1152
    %v1155 = vmul.f32 %v1148, %v375
    %v1156 = vmul.f32 %v1153, %v375
    %v1158 = vrot.slane %v1007, 1
    %v1161 = vadd.f32 %v1155, %v1007
    %v1162 = vadd.f32 %v1156, %v1158
    %v1163 = vadd.f32 %v1161, %v387
    %v1164 = vadd.f32 %v1162, %v387
    %v1165 = vxor.u32 %v1163, 2147483648
    %v1166 = vxor.u32 %v1164, 2147483648
    %v1167 = vmul.f32 %v1165, 1.442695
    %v1168 = vpow.pop %v1167
    %v1169 = vmul.f32 %v1166, 1.442695
    %v1170 = vpow.pop %v1169
    %v1171 = vadd.f32 %v1168, 1.0
    %v1172 = vadd.f32 %v1170, 1.0
    %v1173 = vrcp.pop %v1171
    %v1174 = vmul.f32 1.0, %v1173
    %v1175 = vrcp.pop %v1172
    %v1176 = vmul.f32 1.0, %v1175
    %v1177 = vtanh.pop %v1163
    %v1178 = vtanh.pop %v1164
    %v1179 = vmul.f32 %v1174, %v941
    %v1180 = vmul.f32 %v1176, %v942
    %1183 = vrot.lane.b32.xlu0 %v1177, 64
    %v1184 = vpop.permute.xlu0 %1183
    %1185 = vrot.lane.b32.xlu0 %v1178, 64
    %v1186 = vpop.permute.xlu0 %1185
    %v1189 = vmul.f32 %v1174, %v1184
    %v1190 = vmul.f32 %v1176, %v1186
    %1193 = vrot.lane.b32.xlu0 %v1189, 32
    %v1194 = vpop.permute.xlu0 %1193
    %1195 = vrot.lane.b32.xlu0 %v1190, 32
    %v1196 = vpop.permute.xlu0 %1195
    %v1199 = vadd.f32 %v1179, %v1194
    %v1200 = vadd.f32 %v1180, %v1196
    %v1201 = vtanh.pop %v1199
    %v1202 = vtanh.pop %v1200
    %1205 = vrot.lane.b32.xlu0 %v1201, 64
    %v1206 = vpop.permute.xlu0 %1205
    %1207 = vrot.lane.b32.xlu0 %v1202, 64
    %v1208 = vpop.permute.xlu0 %1207
    %v1211 = vmul.f32 %v1174, %v1206
    %v1212 = vmul.f32 %v1176, %v1208
    %v1215 = vrot.slane %v1212, 7
    %v1216 = vsel %vm441, %v1215, %v1211
    %1217 = vrot.lane.b32.xlu0 %v1216, 32
    %v1218 = vpop.permute.xlu0 %1217
    %v1222 = vrot.slane %v1200, 7
    %v1223 = vsel %vm441, %v1222, %v1199
    %v1225 = vsel %vm70, %v1218, %v1223
    %v1226 = vpack.c.bf16 %v1225, %v1225
    %v1228 = vsel %vm180, %v1226, 0
    %1230 = vmatprep.subr.bf16.mxu0 %v165
    %1231 = vmatpush1.bf16.msra.mxu0 %v164
    %1232 = vmatprep.subr.bf16.mxu0 %v167
    %1233 = vmatpush1.bf16.msra.mxu0 %v166
    %1234 = vmatprep.subr.bf16.mxu0 %v169
    %1235 = vmatpush1.bf16.msra.mxu0 %v168
    %1236 = vmatprep.subr.bf16.mxu0 %v171
    %1237 = vmatpush1.bf16.msra.mxu0 %v170
    %1238 = vmatprep.subr.bf16.mxu0 0
    %1239 = vmatpush1.bf16.msra.mxu0 0
    %1240 = vmatprep.subr.bf16.mxu0 0
    %1241 = vmatpush1.bf16.msra.mxu0 0
    %1242 = vmatprep.subr.bf16.mxu0 0
    %1243 = vmatpush1.bf16.msra.mxu0 0
    %1244 = vmatprep.subr.bf16.mxu0 0
    %1245 = vmatpush1.bf16.msra.mxu0 0
    %1246 = vmatprep.subr.bf16.mxu0 0
    %1247 = vmatpush1.bf16.msra.mxu0 0
    %1248 = vmatprep.subr.bf16.mxu0 0
    %1249 = vmatpush1.bf16.msra.mxu0 0
    %1250 = vmatprep.subr.bf16.mxu0 0
    %1251 = vmatpush1.bf16.msra.mxu0 0
    %1252 = vmatprep.subr.bf16.mxu0 0
    %1253 = vmatpush1.bf16.msra.mxu0 0
    %1254 = vmatprep.subr.bf16.mxu0 0
    %1255 = vmatpush1.bf16.msra.mxu0 0
    %1256 = vmatprep.subr.bf16.mxu0 0
    %1257 = vmatpush1.bf16.msra.mxu0 0
    %1258 = vmatprep.subr.bf16.mxu0 0
    %1259 = vmatpush1.bf16.msra.mxu0 0
    %1260 = vmatprep.subr.bf16.mxu0 0
    %1261 = vmatpush1.bf16.msra.mxu0 0
    %1262 = vmatprep.mubr.bf16.mxu0 0
    %1263 = vmatmul.mubr.bf16.gmra.mrb[0].mxu0 %v1228
    %v1264 = vpop.f32.mrb[0].mxu0
    %v1265 = vadd.f32 0.0, %v1264
    %v1266 = vpop.f32.mrb[0].mxu0
    %v1267 = vadd.f32 0.0, %v1266
    %v1268 = vpop.f32.mrb[0].mxu0
    %v1269 = vpop.f32.mrb[0].mxu0
    %1270 = vdwg.mxu0
    %v1273 = vunpack.c.l.s4 1966171168
    %v1274 = vunpack.c.0.s8 %v1273
    %v1275 = vlaneseq
    %v1276 = vshrl.u32 %v1275, 7
    %v1277 = vsub.s32 %v1274, %v1276
    %v1278 = vrot.slane %v1267, %v1277
    %v1279 = vcombine.high %v1278, %v1278
    %v1281 = vunpack.c.l.s4 1966171168
    %v1282 = vunpack.c.0.s8 %v1281
    %v1283 = vlaneseq
    %v1284 = vshrl.u32 %v1283, 7
    %v1285 = vsub.s32 %v1282, %v1284
    %v1286 = vrot.slane %v1278, %v1285
    %v1288 = vunpack.c.l.s4 1966171168
    %v1289 = vunpack.c.0.s8 %v1288
    %v1290 = vlaneseq
    %v1291 = vshrl.u32 %v1290, 7
    %v1292 = vsub.s32 %v1289, %v1291
    %v1293 = vrot.slane %v1279, %v1292
    %v1294 = vlaneseq
    %v1295 = vshrl.u32 %v1294, 7
    %v1296 = vsub.s32 0, %v1295
    %v1297 = vrot.slane %v1286, %v1296
    %v1298 = vlaneseq
    %v1299 = vshrl.u32 %v1298, 7
    %v1300 = vsub.s32 0, %v1299
    %v1301 = vrot.slane %v1293, %v1300
    %v1304 = vadd.f32 %v1297, %v119
    %v1305 = vadd.f32 %v1301, %v120
    %v1306 = vtanh.pop %v1304
    %v1307 = vtanh.pop %v1305
    %v1308 = vpack.c.bf16 %v1307, %v1306
    %v1310 = vsel %vm70, %v1308, 0
    %1312 = vmatprep.subr.bf16.mxu0 0
    %1313 = vmatpush1.bf16.msra.mxu0 %v264
    %1314 = vmatprep.subr.bf16.mxu0 0
    %1315 = vmatpush1.bf16.msra.mxu0 %v266
    %1316 = vmatprep.subr.bf16.mxu0 0
    %1317 = vmatpush1.bf16.msra.mxu0 0
    %1318 = vmatprep.subr.bf16.mxu0 0
    %1319 = vmatpush1.bf16.msra.mxu0 0
    %1320 = vmatprep.subr.bf16.mxu0 0
    %1321 = vmatpush1.bf16.msra.mxu0 0
    %1322 = vmatprep.subr.bf16.mxu0 0
    %1323 = vmatpush1.bf16.msra.mxu0 0
    %1324 = vmatprep.subr.bf16.mxu0 0
    %1325 = vmatpush1.bf16.msra.mxu0 0
    %1326 = vmatprep.subr.bf16.mxu0 0
    %1327 = vmatpush1.bf16.msra.mxu0 0
    %1328 = vmatprep.subr.bf16.mxu0 0
    %1329 = vmatpush1.bf16.msra.mxu0 0
    %1330 = vmatprep.subr.bf16.mxu0 0
    %1331 = vmatpush1.bf16.msra.mxu0 0
    %1332 = vmatprep.subr.bf16.mxu0 0
    %1333 = vmatpush1.bf16.msra.mxu0 0
    %1334 = vmatprep.subr.bf16.mxu0 0
    %1335 = vmatpush1.bf16.msra.mxu0 0
    %1336 = vmatprep.subr.bf16.mxu0 0
    %1337 = vmatpush1.bf16.msra.mxu0 0
    %1338 = vmatprep.subr.bf16.mxu0 0
    %1339 = vmatpush1.bf16.msra.mxu0 0
    %1340 = vmatprep.subr.bf16.mxu0 0
    %1341 = vmatpush1.bf16.msra.mxu0 0
    %1342 = vmatprep.subr.bf16.mxu0 0
    %1343 = vmatpush1.bf16.msra.mxu0 0
    %1344 = vmatprep.mubr.bf16.mxu0 0
    %1345 = vmatmul.mubr.bf16.gmra.mrb[0].mxu0 %v1310
    %v1346 = vpop.f32.mrb[0].mxu0
    %v1347 = vadd.f32 0.0, %v1346
    %v1348 = vpop.f32.mrb[0].mxu0
    %v1349 = vpop.f32.mrb[0].mxu0
    %v1350 = vadd.f32 0.0, %v1349
    %v1351 = vpop.f32.mrb[0].mxu0
    %1352 = vdwg.mxu0
    %v1353 = vmul.f32 %v1347, 1.442695
    %v1354 = vpow.pop %v1353
    %v1355 = vmul.f32 %v1350, 1.442695
    %v1356 = vpow.pop %v1355
    %1358 = vset.pattern.permute.xlu0 0
    %1359 = vperm.xlu0 %1358, %v1354
    %v1360 = vpop.permute.xlu0 %1359
    %1363 = vset.pattern.permute.xlu0 0
    %1364 = vperm.xlu0 %1363, %v1356
    %v1365 = vpop.permute.xlu0 %1364
    %v1367 = vmul.f32 %v1360, %v130
    %v1368 = vmul.f32 %v1365, %v131
    %v1369 = vsel %vm329, %v1367, 0.0
    %v1370 = vrot.slane %v1369, 4
    %v1371 = vadd.f32 %v1369, %v1370
    %v1372 = vrot.slane %v1371, 2
    %v1373 = vadd.f32 %v1371, %v1372
    %v1374 = vrot.slane %v1373, 1
    %v1375 = vadd.f32 %v1373, %v1374
    %v1376 = vsel %vm329, %v1368, 0.0
    %v1377 = vrot.slane %v1376, 4
    %v1378 = vadd.f32 %v1376, %v1377
    %v1379 = vrot.slane %v1378, 2
    %v1380 = vadd.f32 %v1378, %v1379
    %v1381 = vrot.slane %v1380, 1
    %v1382 = vadd.f32 %v1380, %v1381
    %v1383 = vrcp.pop %v1375
    %v1384 = vrcp.pop %v1382
    %1387 = vrot.lane.b32.xlu0 %v1383, 126
    %v1388 = vpop.permute.xlu0 %1387
    %1389 = vrot.lane.b32.xlu0 %v1384, 126
    %v1390 = vpop.permute.xlu0 %1389
    %v1393 = vmul.f32 %v1375, %v1388
    %v1394 = vmul.f32 %v1382, %v1390
    %1395 = vrot.lane.b32.xlu0 %v138, 124
    %v1396 = vpop.permute.xlu0 %1395
    %1397 = vrot.lane.b32.xlu0 %v357, 124
    %v1398 = vpop.permute.xlu0 %1397
    %v1401 = vadd.f32 %v1393, %v1396
    %v1402 = vadd.f32 %v1394, %v1398
    %1404 = vset.pattern.permute.xlu0 0
    %1405 = vperm.xlu0 %1404, %v1401
    %v1406 = vpop.permute.xlu0 %1405
    %1409 = vset.pattern.permute.xlu0 0
    %1410 = vperm.xlu0 %1409, %v1402
    %v1411 = vpop.permute.xlu0 %1410
    %v1413 = vmul.f32 %v1406, %v375
    %v1414 = vmul.f32 %v1411, %v375
    %v1416 = vrot.slane %v1265, 1
    %v1419 = vadd.f32 %v1413, %v1265
    %v1420 = vadd.f32 %v1414, %v1416
    %v1421 = vadd.f32 %v1419, %v387
    %v1422 = vadd.f32 %v1420, %v387
    %v1423 = vxor.u32 %v1421, 2147483648
    %v1424 = vxor.u32 %v1422, 2147483648
    %v1425 = vmul.f32 %v1423, 1.442695
    %v1426 = vpow.pop %v1425
    %v1427 = vmul.f32 %v1424, 1.442695
    %v1428 = vpow.pop %v1427
    %v1429 = vadd.f32 %v1426, 1.0
    %v1430 = vadd.f32 %v1428, 1.0
    %v1431 = vrcp.pop %v1429
    %v1432 = vmul.f32 1.0, %v1431
    %v1433 = vrcp.pop %v1430
    %v1434 = vmul.f32 1.0, %v1433
    %v1435 = vtanh.pop %v1421
    %v1436 = vtanh.pop %v1422
    %v1437 = vmul.f32 %v1432, %v1199
    %v1438 = vmul.f32 %v1434, %v1200
    %1441 = vrot.lane.b32.xlu0 %v1435, 64
    %v1442 = vpop.permute.xlu0 %1441
    %1443 = vrot.lane.b32.xlu0 %v1436, 64
    %v1444 = vpop.permute.xlu0 %1443
    %v1447 = vmul.f32 %v1432, %v1442
    %v1448 = vmul.f32 %v1434, %v1444
    %1451 = vrot.lane.b32.xlu0 %v1447, 32
    %v1452 = vpop.permute.xlu0 %1451
    %1453 = vrot.lane.b32.xlu0 %v1448, 32
    %v1454 = vpop.permute.xlu0 %1453
    %v1457 = vadd.f32 %v1437, %v1452
    %v1458 = vadd.f32 %v1438, %v1454
    %v1459 = vtanh.pop %v1457
    %v1460 = vtanh.pop %v1458
    %1463 = vrot.lane.b32.xlu0 %v1459, 64
    %v1464 = vpop.permute.xlu0 %1463
    %1465 = vrot.lane.b32.xlu0 %v1460, 64
    %v1466 = vpop.permute.xlu0 %1465
    %v1469 = vmul.f32 %v1432, %v1464
    %v1470 = vmul.f32 %v1434, %v1466
    %v1473 = vrot.slane %v1470, 7
    %v1474 = vsel %vm441, %v1473, %v1469
    %1475 = vrot.lane.b32.xlu0 %v1474, 32
    %v1476 = vpop.permute.xlu0 %1475
    %v1480 = vrot.slane %v1458, 7
    %v1481 = vsel %vm441, %v1480, %v1457
    %v1483 = vsel %vm70, %v1476, %v1481
    %v1484 = vpack.c.bf16 %v1483, %v1483
    %v1486 = vsel %vm180, %v1484, 0
    %1488 = vmatprep.subr.bf16.mxu0 %v165
    %1489 = vmatpush1.bf16.msra.mxu0 %v164
    %1490 = vmatprep.subr.bf16.mxu0 %v167
    %1491 = vmatpush1.bf16.msra.mxu0 %v166
    %1492 = vmatprep.subr.bf16.mxu0 %v169
    %1493 = vmatpush1.bf16.msra.mxu0 %v168
    %1494 = vmatprep.subr.bf16.mxu0 %v171
    %1495 = vmatpush1.bf16.msra.mxu0 %v170
    %1496 = vmatprep.subr.bf16.mxu0 0
    %1497 = vmatpush1.bf16.msra.mxu0 0
    %1498 = vmatprep.subr.bf16.mxu0 0
    %1499 = vmatpush1.bf16.msra.mxu0 0
    %1500 = vmatprep.subr.bf16.mxu0 0
    %1501 = vmatpush1.bf16.msra.mxu0 0
    %1502 = vmatprep.subr.bf16.mxu0 0
    %1503 = vmatpush1.bf16.msra.mxu0 0
    %1504 = vmatprep.subr.bf16.mxu0 0
    %1505 = vmatpush1.bf16.msra.mxu0 0
    %1506 = vmatprep.subr.bf16.mxu0 0
    %1507 = vmatpush1.bf16.msra.mxu0 0
    %1508 = vmatprep.subr.bf16.mxu0 0
    %1509 = vmatpush1.bf16.msra.mxu0 0
    %1510 = vmatprep.subr.bf16.mxu0 0
    %1511 = vmatpush1.bf16.msra.mxu0 0
    %1512 = vmatprep.subr.bf16.mxu0 0
    %1513 = vmatpush1.bf16.msra.mxu0 0
    %1514 = vmatprep.subr.bf16.mxu0 0
    %1515 = vmatpush1.bf16.msra.mxu0 0
    %1516 = vmatprep.subr.bf16.mxu0 0
    %1517 = vmatpush1.bf16.msra.mxu0 0
    %1518 = vmatprep.subr.bf16.mxu0 0
    %1519 = vmatpush1.bf16.msra.mxu0 0
    %1520 = vmatprep.mubr.bf16.mxu0 0
    %1521 = vmatmul.mubr.bf16.gmra.mrb[0].mxu0 %v1486
    %v1522 = vpop.f32.mrb[0].mxu0
    %v1523 = vadd.f32 0.0, %v1522
    %v1524 = vpop.f32.mrb[0].mxu0
    %v1525 = vadd.f32 0.0, %v1524
    %v1526 = vpop.f32.mrb[0].mxu0
    %v1527 = vpop.f32.mrb[0].mxu0
    %1528 = vdwg.mxu0
    %v1531 = vunpack.c.l.s4 1966171168
    %v1532 = vunpack.c.0.s8 %v1531
    %v1533 = vlaneseq
    %v1534 = vshrl.u32 %v1533, 7
    %v1535 = vsub.s32 %v1532, %v1534
    %v1536 = vrot.slane %v1525, %v1535
    %v1537 = vcombine.high %v1536, %v1536
    %v1539 = vunpack.c.l.s4 1966171168
    %v1540 = vunpack.c.0.s8 %v1539
    %v1541 = vlaneseq
    %v1542 = vshrl.u32 %v1541, 7
    %v1543 = vsub.s32 %v1540, %v1542
    %v1544 = vrot.slane %v1536, %v1543
    %v1546 = vunpack.c.l.s4 1966171168
    %v1547 = vunpack.c.0.s8 %v1546
    %v1548 = vlaneseq
    %v1549 = vshrl.u32 %v1548, 7
    %v1550 = vsub.s32 %v1547, %v1549
    %v1551 = vrot.slane %v1537, %v1550
    %v1552 = vlaneseq
    %v1553 = vshrl.u32 %v1552, 7
    %v1554 = vsub.s32 0, %v1553
    %v1555 = vrot.slane %v1544, %v1554
    %v1556 = vlaneseq
    %v1557 = vshrl.u32 %v1556, 7
    %v1558 = vsub.s32 0, %v1557
    %v1559 = vrot.slane %v1551, %v1558
    %v1562 = vadd.f32 %v1555, %v119
    %v1563 = vadd.f32 %v1559, %v120
    %v1564 = vtanh.pop %v1562
    %v1565 = vtanh.pop %v1563
    %v1566 = vpack.c.bf16 %v1565, %v1564
    %v1568 = vsel %vm70, %v1566, 0
    %1570 = vmatprep.subr.bf16.mxu0 0
    %1571 = vmatpush1.bf16.msra.mxu0 %v264
    %1572 = vmatprep.subr.bf16.mxu0 0
    %1573 = vmatpush1.bf16.msra.mxu0 %v266
    %1574 = vmatprep.subr.bf16.mxu0 0
    %1575 = vmatpush1.bf16.msra.mxu0 0
    %1576 = vmatprep.subr.bf16.mxu0 0
    %1577 = vmatpush1.bf16.msra.mxu0 0
    %1578 = vmatprep.subr.bf16.mxu0 0
    %1579 = vmatpush1.bf16.msra.mxu0 0
    %1580 = vmatprep.subr.bf16.mxu0 0
    %1581 = vmatpush1.bf16.msra.mxu0 0
    %1582 = vmatprep.subr.bf16.mxu0 0
    %1583 = vmatpush1.bf16.msra.mxu0 0
    %1584 = vmatprep.subr.bf16.mxu0 0
    %1585 = vmatpush1.bf16.msra.mxu0 0
    %1586 = vmatprep.subr.bf16.mxu0 0
    %1587 = vmatpush1.bf16.msra.mxu0 0
    %1588 = vmatprep.subr.bf16.mxu0 0
    %1589 = vmatpush1.bf16.msra.mxu0 0
    %1590 = vmatprep.subr.bf16.mxu0 0
    %1591 = vmatpush1.bf16.msra.mxu0 0
    %1592 = vmatprep.subr.bf16.mxu0 0
    %1593 = vmatpush1.bf16.msra.mxu0 0
    %1594 = vmatprep.subr.bf16.mxu0 0
    %1595 = vmatpush1.bf16.msra.mxu0 0
    %1596 = vmatprep.subr.bf16.mxu0 0
    %1597 = vmatpush1.bf16.msra.mxu0 0
    %1598 = vmatprep.subr.bf16.mxu0 0
    %1599 = vmatpush1.bf16.msra.mxu0 0
    %1600 = vmatprep.subr.bf16.mxu0 0
    %1601 = vmatpush1.bf16.msra.mxu0 0
    %1602 = vmatprep.mubr.bf16.mxu0 0
    %1603 = vmatmul.mubr.bf16.gmra.mrb[0].mxu0 %v1568
    %v1604 = vpop.f32.mrb[0].mxu0
    %v1605 = vadd.f32 0.0, %v1604
    %v1606 = vpop.f32.mrb[0].mxu0
    %v1607 = vpop.f32.mrb[0].mxu0
    %v1608 = vadd.f32 0.0, %v1607
    %v1609 = vpop.f32.mrb[0].mxu0
    %1610 = vdwg.mxu0
    %v1611 = vmul.f32 %v1605, 1.442695
    %v1612 = vpow.pop %v1611
    %v1613 = vmul.f32 %v1608, 1.442695
    %v1614 = vpow.pop %v1613
    %1616 = vset.pattern.permute.xlu0 0
    %1617 = vperm.xlu0 %1616, %v1612
    %v1618 = vpop.permute.xlu0 %1617
    %1621 = vset.pattern.permute.xlu0 0
    %1622 = vperm.xlu0 %1621, %v1614
    %v1623 = vpop.permute.xlu0 %1622
    %v1625 = vmul.f32 %v1618, %v130
    %v1626 = vmul.f32 %v1623, %v131
    %v1627 = vsel %vm329, %v1625, 0.0
    %v1628 = vrot.slane %v1627, 4
    %v1629 = vadd.f32 %v1627, %v1628
    %v1630 = vrot.slane %v1629, 2
    %v1631 = vadd.f32 %v1629, %v1630
    %v1632 = vrot.slane %v1631, 1
    %v1633 = vadd.f32 %v1631, %v1632
    %v1634 = vsel %vm329, %v1626, 0.0
    %v1635 = vrot.slane %v1634, 4
    %v1636 = vadd.f32 %v1634, %v1635
    %v1637 = vrot.slane %v1636, 2
    %v1638 = vadd.f32 %v1636, %v1637
    %v1639 = vrot.slane %v1638, 1
    %v1640 = vadd.f32 %v1638, %v1639
    %v1641 = vrcp.pop %v1633
    %v1642 = vrcp.pop %v1640
    %1645 = vrot.lane.b32.xlu0 %v1641, 126
    %v1646 = vpop.permute.xlu0 %1645
    %1647 = vrot.lane.b32.xlu0 %v1642, 126
    %v1648 = vpop.permute.xlu0 %1647
    %v1651 = vmul.f32 %v1633, %v1646
    %v1652 = vmul.f32 %v1640, %v1648
    %1653 = vrot.lane.b32.xlu0 %v138, 123
    %v1654 = vpop.permute.xlu0 %1653
    %1655 = vrot.lane.b32.xlu0 %v357, 123
    %v1656 = vpop.permute.xlu0 %1655
    %v1659 = vadd.f32 %v1651, %v1654
    %v1660 = vadd.f32 %v1652, %v1656
    %1662 = vset.pattern.permute.xlu0 0
    %1663 = vperm.xlu0 %1662, %v1659
    %v1664 = vpop.permute.xlu0 %1663
    %1667 = vset.pattern.permute.xlu0 0
    %1668 = vperm.xlu0 %1667, %v1660
    %v1669 = vpop.permute.xlu0 %1668
    %v1671 = vmul.f32 %v1664, %v375
    %v1672 = vmul.f32 %v1669, %v375
    %v1674 = vrot.slane %v1523, 1
    %v1677 = vadd.f32 %v1671, %v1523
    %v1678 = vadd.f32 %v1672, %v1674
    %v1679 = vadd.f32 %v1677, %v387
    %v1680 = vadd.f32 %v1678, %v387
    %v1681 = vxor.u32 %v1679, 2147483648
    %v1682 = vxor.u32 %v1680, 2147483648
    %v1683 = vmul.f32 %v1681, 1.442695
    %v1684 = vpow.pop %v1683
    %v1685 = vmul.f32 %v1682, 1.442695
    %v1686 = vpow.pop %v1685
    %v1687 = vadd.f32 %v1684, 1.0
    %v1688 = vadd.f32 %v1686, 1.0
    %v1689 = vrcp.pop %v1687
    %v1690 = vmul.f32 1.0, %v1689
    %v1691 = vrcp.pop %v1688
    %v1692 = vmul.f32 1.0, %v1691
    %v1693 = vtanh.pop %v1679
    %v1694 = vtanh.pop %v1680
    %v1695 = vmul.f32 %v1690, %v1457
    %v1696 = vmul.f32 %v1692, %v1458
    %1699 = vrot.lane.b32.xlu0 %v1693, 64
    %v1700 = vpop.permute.xlu0 %1699
    %1701 = vrot.lane.b32.xlu0 %v1694, 64
    %v1702 = vpop.permute.xlu0 %1701
    %v1705 = vmul.f32 %v1690, %v1700
    %v1706 = vmul.f32 %v1692, %v1702
    %1709 = vrot.lane.b32.xlu0 %v1705, 32
    %v1710 = vpop.permute.xlu0 %1709
    %1711 = vrot.lane.b32.xlu0 %v1706, 32
    %v1712 = vpop.permute.xlu0 %1711
    %v1715 = vadd.f32 %v1695, %v1710
    %v1716 = vadd.f32 %v1696, %v1712
    %v1717 = vtanh.pop %v1715
    %v1718 = vtanh.pop %v1716
    %1721 = vrot.lane.b32.xlu0 %v1717, 64
    %v1722 = vpop.permute.xlu0 %1721
    %1723 = vrot.lane.b32.xlu0 %v1718, 64
    %v1724 = vpop.permute.xlu0 %1723
    %v1727 = vmul.f32 %v1690, %v1722
    %v1728 = vmul.f32 %v1692, %v1724
    %v1731 = vrot.slane %v1728, 7
    %v1732 = vsel %vm441, %v1731, %v1727
    %1733 = vrot.lane.b32.xlu0 %v1732, 32
    %v1734 = vpop.permute.xlu0 %1733
    %v1738 = vrot.slane %v1716, 7
    %v1739 = vsel %vm441, %v1738, %v1715
    %v1741 = vsel %vm70, %v1734, %v1739
    %v1742 = vpack.c.bf16 %v1741, %v1741
    %v1744 = vsel %vm180, %v1742, 0
    %1746 = vmatprep.subr.bf16.mxu0 %v165
    %1747 = vmatpush1.bf16.msra.mxu0 %v164
    %1748 = vmatprep.subr.bf16.mxu0 %v167
    %1749 = vmatpush1.bf16.msra.mxu0 %v166
    %1750 = vmatprep.subr.bf16.mxu0 %v169
    %1751 = vmatpush1.bf16.msra.mxu0 %v168
    %1752 = vmatprep.subr.bf16.mxu0 %v171
    %1753 = vmatpush1.bf16.msra.mxu0 %v170
    %1754 = vmatprep.subr.bf16.mxu0 0
    %1755 = vmatpush1.bf16.msra.mxu0 0
    %1756 = vmatprep.subr.bf16.mxu0 0
    %1757 = vmatpush1.bf16.msra.mxu0 0
    %1758 = vmatprep.subr.bf16.mxu0 0
    %1759 = vmatpush1.bf16.msra.mxu0 0
    %1760 = vmatprep.subr.bf16.mxu0 0
    %1761 = vmatpush1.bf16.msra.mxu0 0
    %1762 = vmatprep.subr.bf16.mxu0 0
    %1763 = vmatpush1.bf16.msra.mxu0 0
    %1764 = vmatprep.subr.bf16.mxu0 0
    %1765 = vmatpush1.bf16.msra.mxu0 0
    %1766 = vmatprep.subr.bf16.mxu0 0
    %1767 = vmatpush1.bf16.msra.mxu0 0
    %1768 = vmatprep.subr.bf16.mxu0 0
    %1769 = vmatpush1.bf16.msra.mxu0 0
    %1770 = vmatprep.subr.bf16.mxu0 0
    %1771 = vmatpush1.bf16.msra.mxu0 0
    %1772 = vmatprep.subr.bf16.mxu0 0
    %1773 = vmatpush1.bf16.msra.mxu0 0
    %1774 = vmatprep.subr.bf16.mxu0 0
    %1775 = vmatpush1.bf16.msra.mxu0 0
    %1776 = vmatprep.subr.bf16.mxu0 0
    %1777 = vmatpush1.bf16.msra.mxu0 0
    %1778 = vmatprep.mubr.bf16.mxu0 0
    %1779 = vmatmul.mubr.bf16.gmra.mrb[0].mxu0 %v1744
    %v1780 = vpop.f32.mrb[0].mxu0
    %v1781 = vadd.f32 0.0, %v1780
    %v1782 = vpop.f32.mrb[0].mxu0
    %v1783 = vadd.f32 0.0, %v1782
    %v1784 = vpop.f32.mrb[0].mxu0
    %v1785 = vpop.f32.mrb[0].mxu0
    %1786 = vdwg.mxu0
    %v1789 = vunpack.c.l.s4 1966171168
    %v1790 = vunpack.c.0.s8 %v1789
    %v1791 = vlaneseq
    %v1792 = vshrl.u32 %v1791, 7
    %v1793 = vsub.s32 %v1790, %v1792
    %v1794 = vrot.slane %v1783, %v1793
    %v1795 = vcombine.high %v1794, %v1794
    %v1797 = vunpack.c.l.s4 1966171168
    %v1798 = vunpack.c.0.s8 %v1797
    %v1799 = vlaneseq
    %v1800 = vshrl.u32 %v1799, 7
    %v1801 = vsub.s32 %v1798, %v1800
    %v1802 = vrot.slane %v1794, %v1801
    %v1804 = vunpack.c.l.s4 1966171168
    %v1805 = vunpack.c.0.s8 %v1804
    %v1806 = vlaneseq
    %v1807 = vshrl.u32 %v1806, 7
    %v1808 = vsub.s32 %v1805, %v1807
    %v1809 = vrot.slane %v1795, %v1808
    %v1810 = vlaneseq
    %v1811 = vshrl.u32 %v1810, 7
    %v1812 = vsub.s32 0, %v1811
    %v1813 = vrot.slane %v1802, %v1812
    %v1814 = vlaneseq
    %v1815 = vshrl.u32 %v1814, 7
    %v1816 = vsub.s32 0, %v1815
    %v1817 = vrot.slane %v1809, %v1816
    %v1820 = vadd.f32 %v1813, %v119
    %v1821 = vadd.f32 %v1817, %v120
    %v1822 = vtanh.pop %v1820
    %v1823 = vtanh.pop %v1821
    %v1824 = vpack.c.bf16 %v1823, %v1822
    %v1826 = vsel %vm70, %v1824, 0
    %1828 = vmatprep.subr.bf16.mxu0 0
    %1829 = vmatpush1.bf16.msra.mxu0 %v264
    %1830 = vmatprep.subr.bf16.mxu0 0
    %1831 = vmatpush1.bf16.msra.mxu0 %v266
    %1832 = vmatprep.subr.bf16.mxu0 0
    %1833 = vmatpush1.bf16.msra.mxu0 0
    %1834 = vmatprep.subr.bf16.mxu0 0
    %1835 = vmatpush1.bf16.msra.mxu0 0
    %1836 = vmatprep.subr.bf16.mxu0 0
    %1837 = vmatpush1.bf16.msra.mxu0 0
    %1838 = vmatprep.subr.bf16.mxu0 0
    %1839 = vmatpush1.bf16.msra.mxu0 0
    %1840 = vmatprep.subr.bf16.mxu0 0
    %1841 = vmatpush1.bf16.msra.mxu0 0
    %1842 = vmatprep.subr.bf16.mxu0 0
    %1843 = vmatpush1.bf16.msra.mxu0 0
    %1844 = vmatprep.subr.bf16.mxu0 0
    %1845 = vmatpush1.bf16.msra.mxu0 0
    %1846 = vmatprep.subr.bf16.mxu0 0
    %1847 = vmatpush1.bf16.msra.mxu0 0
    %1848 = vmatprep.subr.bf16.mxu0 0
    %1849 = vmatpush1.bf16.msra.mxu0 0
    %1850 = vmatprep.subr.bf16.mxu0 0
    %1851 = vmatpush1.bf16.msra.mxu0 0
    %1852 = vmatprep.subr.bf16.mxu0 0
    %1853 = vmatpush1.bf16.msra.mxu0 0
    %1854 = vmatprep.subr.bf16.mxu0 0
    %1855 = vmatpush1.bf16.msra.mxu0 0
    %1856 = vmatprep.subr.bf16.mxu0 0
    %1857 = vmatpush1.bf16.msra.mxu0 0
    %1858 = vmatprep.subr.bf16.mxu0 0
    %1859 = vmatpush1.bf16.msra.mxu0 0
    %1860 = vmatprep.mubr.bf16.mxu0 0
    %1861 = vmatmul.mubr.bf16.gmra.mrb[0].mxu0 %v1826
    %v1862 = vpop.f32.mrb[0].mxu0
    %v1863 = vadd.f32 0.0, %v1862
    %v1864 = vpop.f32.mrb[0].mxu0
    %v1865 = vpop.f32.mrb[0].mxu0
    %v1866 = vadd.f32 0.0, %v1865
    %v1867 = vpop.f32.mrb[0].mxu0
    %1868 = vdwg.mxu0
    %v1869 = vmul.f32 %v1863, 1.442695
    %v1870 = vpow.pop %v1869
    %v1871 = vmul.f32 %v1866, 1.442695
    %v1872 = vpow.pop %v1871
    %1874 = vset.pattern.permute.xlu0 0
    %1875 = vperm.xlu0 %1874, %v1870
    %v1876 = vpop.permute.xlu0 %1875
    %1879 = vset.pattern.permute.xlu0 0
    %1880 = vperm.xlu0 %1879, %v1872
    %v1881 = vpop.permute.xlu0 %1880
    %v1883 = vmul.f32 %v1876, %v130
    %v1884 = vmul.f32 %v1881, %v131
    %v1885 = vsel %vm329, %v1883, 0.0
    %v1886 = vrot.slane %v1885, 4
    %v1887 = vadd.f32 %v1885, %v1886
    %v1888 = vrot.slane %v1887, 2
    %v1889 = vadd.f32 %v1887, %v1888
    %v1890 = vrot.slane %v1889, 1
    %v1891 = vadd.f32 %v1889, %v1890
    %v1892 = vsel %vm329, %v1884, 0.0
    %v1893 = vrot.slane %v1892, 4
    %v1894 = vadd.f32 %v1892, %v1893
    %v1895 = vrot.slane %v1894, 2
    %v1896 = vadd.f32 %v1894, %v1895
    %v1897 = vrot.slane %v1896, 1
    %v1898 = vadd.f32 %v1896, %v1897
    %v1899 = vrcp.pop %v1891
    %v1900 = vrcp.pop %v1898
    %1903 = vrot.lane.b32.xlu0 %v1899, 126
    %v1904 = vpop.permute.xlu0 %1903
    %1905 = vrot.lane.b32.xlu0 %v1900, 126
    %v1906 = vpop.permute.xlu0 %1905
    %v1909 = vmul.f32 %v1891, %v1904
    %v1910 = vmul.f32 %v1898, %v1906
    %1911 = vrot.lane.b32.xlu0 %v138, 122
    %v1912 = vpop.permute.xlu0 %1911
    %1913 = vrot.lane.b32.xlu0 %v357, 122
    %v1914 = vpop.permute.xlu0 %1913
    %v1917 = vadd.f32 %v1909, %v1912
    %v1918 = vadd.f32 %v1910, %v1914
    %1920 = vset.pattern.permute.xlu0 0
    %1921 = vperm.xlu0 %1920, %v1917
    %v1922 = vpop.permute.xlu0 %1921
    %1925 = vset.pattern.permute.xlu0 0
    %1926 = vperm.xlu0 %1925, %v1918
    %v1927 = vpop.permute.xlu0 %1926
    %v1929 = vmul.f32 %v1922, %v375
    %v1930 = vmul.f32 %v1927, %v375
    %v1932 = vrot.slane %v1781, 1
    %v1935 = vadd.f32 %v1929, %v1781
    %v1936 = vadd.f32 %v1930, %v1932
    %v1937 = vadd.f32 %v1935, %v387
    %v1938 = vadd.f32 %v1936, %v387
    %v1939 = vxor.u32 %v1937, 2147483648
    %v1940 = vxor.u32 %v1938, 2147483648
    %v1941 = vmul.f32 %v1939, 1.442695
    %v1942 = vpow.pop %v1941
    %v1943 = vmul.f32 %v1940, 1.442695
    %v1944 = vpow.pop %v1943
    %v1945 = vadd.f32 %v1942, 1.0
    %v1946 = vadd.f32 %v1944, 1.0
    %v1947 = vrcp.pop %v1945
    %v1948 = vmul.f32 1.0, %v1947
    %v1949 = vrcp.pop %v1946
    %v1950 = vmul.f32 1.0, %v1949
    %v1951 = vtanh.pop %v1937
    %v1952 = vtanh.pop %v1938
    %v1953 = vmul.f32 %v1948, %v1715
    %v1954 = vmul.f32 %v1950, %v1716
    %1957 = vrot.lane.b32.xlu0 %v1951, 64
    %v1958 = vpop.permute.xlu0 %1957
    %1959 = vrot.lane.b32.xlu0 %v1952, 64
    %v1960 = vpop.permute.xlu0 %1959
    %v1963 = vmul.f32 %v1948, %v1958
    %v1964 = vmul.f32 %v1950, %v1960
    %1967 = vrot.lane.b32.xlu0 %v1963, 32
    %v1968 = vpop.permute.xlu0 %1967
    %1969 = vrot.lane.b32.xlu0 %v1964, 32
    %v1970 = vpop.permute.xlu0 %1969
    %v1973 = vadd.f32 %v1953, %v1968
    %v1974 = vadd.f32 %v1954, %v1970
    %v1975 = vtanh.pop %v1973
    %v1976 = vtanh.pop %v1974
    %1979 = vrot.lane.b32.xlu0 %v1975, 64
    %v1980 = vpop.permute.xlu0 %1979
    %1981 = vrot.lane.b32.xlu0 %v1976, 64
    %v1982 = vpop.permute.xlu0 %1981
    %v1985 = vmul.f32 %v1948, %v1980
    %v1986 = vmul.f32 %v1950, %v1982
    %v1989 = vrot.slane %v1986, 7
    %v1990 = vsel %vm441, %v1989, %v1985
    %1991 = vrot.lane.b32.xlu0 %v1990, 32
    %v1992 = vpop.permute.xlu0 %1991
    %v1996 = vrot.slane %v1974, 7
    %v1997 = vsel %vm441, %v1996, %v1973
    %v1999 = vsel %vm70, %v1992, %v1997
    %v2000 = vpack.c.bf16 %v1999, %v1999
    %v2002 = vsel %vm180, %v2000, 0
    %2004 = vmatprep.subr.bf16.mxu0 %v165
    %2005 = vmatpush1.bf16.msra.mxu0 %v164
    %2006 = vmatprep.subr.bf16.mxu0 %v167
    %2007 = vmatpush1.bf16.msra.mxu0 %v166
    %2008 = vmatprep.subr.bf16.mxu0 %v169
    %2009 = vmatpush1.bf16.msra.mxu0 %v168
    %2010 = vmatprep.subr.bf16.mxu0 %v171
    %2011 = vmatpush1.bf16.msra.mxu0 %v170
    %2012 = vmatprep.subr.bf16.mxu0 0
    %2013 = vmatpush1.bf16.msra.mxu0 0
    %2014 = vmatprep.subr.bf16.mxu0 0
    %2015 = vmatpush1.bf16.msra.mxu0 0
    %2016 = vmatprep.subr.bf16.mxu0 0
    %2017 = vmatpush1.bf16.msra.mxu0 0
    %2018 = vmatprep.subr.bf16.mxu0 0
    %2019 = vmatpush1.bf16.msra.mxu0 0
    %2020 = vmatprep.subr.bf16.mxu0 0
    %2021 = vmatpush1.bf16.msra.mxu0 0
    %2022 = vmatprep.subr.bf16.mxu0 0
    %2023 = vmatpush1.bf16.msra.mxu0 0
    %2024 = vmatprep.subr.bf16.mxu0 0
    %2025 = vmatpush1.bf16.msra.mxu0 0
    %2026 = vmatprep.subr.bf16.mxu0 0
    %2027 = vmatpush1.bf16.msra.mxu0 0
    %2028 = vmatprep.subr.bf16.mxu0 0
    %2029 = vmatpush1.bf16.msra.mxu0 0
    %2030 = vmatprep.subr.bf16.mxu0 0
    %2031 = vmatpush1.bf16.msra.mxu0 0
    %2032 = vmatprep.subr.bf16.mxu0 0
    %2033 = vmatpush1.bf16.msra.mxu0 0
    %2034 = vmatprep.subr.bf16.mxu0 0
    %2035 = vmatpush1.bf16.msra.mxu0 0
    %2036 = vmatprep.mubr.bf16.mxu0 0
    %2037 = vmatmul.mubr.bf16.gmra.mrb[0].mxu0 %v2002
    %v2038 = vpop.f32.mrb[0].mxu0
    %v2039 = vadd.f32 0.0, %v2038
    %v2040 = vpop.f32.mrb[0].mxu0
    %v2041 = vadd.f32 0.0, %v2040
    %v2042 = vpop.f32.mrb[0].mxu0
    %v2043 = vpop.f32.mrb[0].mxu0
    %2044 = vdwg.mxu0
    %v2047 = vunpack.c.l.s4 1966171168
    %v2048 = vunpack.c.0.s8 %v2047
    %v2049 = vlaneseq
    %v2050 = vshrl.u32 %v2049, 7
    %v2051 = vsub.s32 %v2048, %v2050
    %v2052 = vrot.slane %v2041, %v2051
    %v2053 = vcombine.high %v2052, %v2052
    %v2055 = vunpack.c.l.s4 1966171168
    %v2056 = vunpack.c.0.s8 %v2055
    %v2057 = vlaneseq
    %v2058 = vshrl.u32 %v2057, 7
    %v2059 = vsub.s32 %v2056, %v2058
    %v2060 = vrot.slane %v2052, %v2059
    %v2062 = vunpack.c.l.s4 1966171168
    %v2063 = vunpack.c.0.s8 %v2062
    %v2064 = vlaneseq
    %v2065 = vshrl.u32 %v2064, 7
    %v2066 = vsub.s32 %v2063, %v2065
    %v2067 = vrot.slane %v2053, %v2066
    %v2068 = vlaneseq
    %v2069 = vshrl.u32 %v2068, 7
    %v2070 = vsub.s32 0, %v2069
    %v2071 = vrot.slane %v2060, %v2070
    %v2072 = vlaneseq
    %v2073 = vshrl.u32 %v2072, 7
    %v2074 = vsub.s32 0, %v2073
    %v2075 = vrot.slane %v2067, %v2074
    %v2078 = vadd.f32 %v2071, %v119
    %v2079 = vadd.f32 %v2075, %v120
    %v2080 = vtanh.pop %v2078
    %v2081 = vtanh.pop %v2079
    %v2082 = vpack.c.bf16 %v2081, %v2080
    %v2084 = vsel %vm70, %v2082, 0
    %2086 = vmatprep.subr.bf16.mxu0 0
    %2087 = vmatpush1.bf16.msra.mxu0 %v264
    %2088 = vmatprep.subr.bf16.mxu0 0
    %2089 = vmatpush1.bf16.msra.mxu0 %v266
    %2090 = vmatprep.subr.bf16.mxu0 0
    %2091 = vmatpush1.bf16.msra.mxu0 0
    %2092 = vmatprep.subr.bf16.mxu0 0
    %2093 = vmatpush1.bf16.msra.mxu0 0
    %2094 = vmatprep.subr.bf16.mxu0 0
    %2095 = vmatpush1.bf16.msra.mxu0 0
    %2096 = vmatprep.subr.bf16.mxu0 0
    %2097 = vmatpush1.bf16.msra.mxu0 0
    %2098 = vmatprep.subr.bf16.mxu0 0
    %2099 = vmatpush1.bf16.msra.mxu0 0
    %2100 = vmatprep.subr.bf16.mxu0 0
    %2101 = vmatpush1.bf16.msra.mxu0 0
    %2102 = vmatprep.subr.bf16.mxu0 0
    %2103 = vmatpush1.bf16.msra.mxu0 0
    %2104 = vmatprep.subr.bf16.mxu0 0
    %2105 = vmatpush1.bf16.msra.mxu0 0
    %2106 = vmatprep.subr.bf16.mxu0 0
    %2107 = vmatpush1.bf16.msra.mxu0 0
    %2108 = vmatprep.subr.bf16.mxu0 0
    %2109 = vmatpush1.bf16.msra.mxu0 0
    %2110 = vmatprep.subr.bf16.mxu0 0
    %2111 = vmatpush1.bf16.msra.mxu0 0
    %2112 = vmatprep.subr.bf16.mxu0 0
    %2113 = vmatpush1.bf16.msra.mxu0 0
    %2114 = vmatprep.subr.bf16.mxu0 0
    %2115 = vmatpush1.bf16.msra.mxu0 0
    %2116 = vmatprep.subr.bf16.mxu0 0
    %2117 = vmatpush1.bf16.msra.mxu0 0
    %2118 = vmatprep.mubr.bf16.mxu0 0
    %2119 = vmatmul.mubr.bf16.gmra.mrb[0].mxu0 %v2084
    %v2120 = vpop.f32.mrb[0].mxu0
    %v2121 = vadd.f32 0.0, %v2120
    %v2122 = vpop.f32.mrb[0].mxu0
    %v2123 = vpop.f32.mrb[0].mxu0
    %v2124 = vadd.f32 0.0, %v2123
    %v2125 = vpop.f32.mrb[0].mxu0
    %2126 = vdwg.mxu0
    %v2127 = vmul.f32 %v2121, 1.442695
    %v2128 = vpow.pop %v2127
    %v2129 = vmul.f32 %v2124, 1.442695
    %v2130 = vpow.pop %v2129
    %2132 = vset.pattern.permute.xlu0 0
    %2133 = vperm.xlu0 %2132, %v2128
    %v2134 = vpop.permute.xlu0 %2133
    %2137 = vset.pattern.permute.xlu0 0
    %2138 = vperm.xlu0 %2137, %v2130
    %v2139 = vpop.permute.xlu0 %2138
    %v2141 = vmul.f32 %v2134, %v130
    %v2142 = vmul.f32 %v2139, %v131
    %v2143 = vsel %vm329, %v2141, 0.0
    %v2144 = vrot.slane %v2143, 4
    %v2145 = vadd.f32 %v2143, %v2144
    %v2146 = vrot.slane %v2145, 2
    %v2147 = vadd.f32 %v2145, %v2146
    %v2148 = vrot.slane %v2147, 1
    %v2149 = vadd.f32 %v2147, %v2148
    %v2150 = vsel %vm329, %v2142, 0.0
    %v2151 = vrot.slane %v2150, 4
    %v2152 = vadd.f32 %v2150, %v2151
    %v2153 = vrot.slane %v2152, 2
    %v2154 = vadd.f32 %v2152, %v2153
    %v2155 = vrot.slane %v2154, 1
    %v2156 = vadd.f32 %v2154, %v2155
    %v2157 = vrcp.pop %v2149
    %v2158 = vrcp.pop %v2156
    %2161 = vrot.lane.b32.xlu0 %v2157, 126
    %v2162 = vpop.permute.xlu0 %2161
    %2163 = vrot.lane.b32.xlu0 %v2158, 126
    %v2164 = vpop.permute.xlu0 %2163
    %v2167 = vmul.f32 %v2149, %v2162
    %v2168 = vmul.f32 %v2156, %v2164
    %2169 = vrot.lane.b32.xlu0 %v2157, 127
    %v2170 = vpop.permute.xlu0 %2169
    %2171 = vrot.lane.b32.xlu0 %v2158, 127
    %v2172 = vpop.permute.xlu0 %2171
    %v2175 = vmul.f32 %v2149, %v2170
    %v2176 = vmul.f32 %v2156, %v2172
    %2177 = vrot.lane.b32.xlu0 %v138, 121
    %v2178 = vpop.permute.xlu0 %2177
    %2179 = vrot.lane.b32.xlu0 %v357, 121
    %v2180 = vpop.permute.xlu0 %2179
    %v2183 = vadd.f32 %v2167, %v2178
    %v2184 = vadd.f32 %v2168, %v2180
    %2186 = vset.pattern.permute.xlu0 0
    %2187 = vperm.xlu0 %2186, %v2183
    %v2188 = vpop.permute.xlu0 %2187
    %2191 = vset.pattern.permute.xlu0 0
    %2192 = vperm.xlu0 %2191, %v2184
    %v2193 = vpop.permute.xlu0 %2192
    %v2195 = vmul.f32 %v2188, %v375
    %v2196 = vmul.f32 %v2193, %v375
    %v2198 = vrot.slane %v2039, 1
    %v2201 = vadd.f32 %v2195, %v2039
    %v2202 = vadd.f32 %v2196, %v2198
    %v2203 = vadd.f32 %v2201, %v387
    %v2204 = vadd.f32 %v2202, %v387
    %v2205 = vxor.u32 %v2203, 2147483648
    %v2206 = vxor.u32 %v2204, 2147483648
    %v2207 = vmul.f32 %v2205, 1.442695
    %v2208 = vpow.pop %v2207
    %v2209 = vmul.f32 %v2206, 1.442695
    %v2210 = vpow.pop %v2209
    %v2211 = vadd.f32 %v2208, 1.0
    %v2212 = vadd.f32 %v2210, 1.0
    %v2213 = vrcp.pop %v2211
    %v2214 = vmul.f32 1.0, %v2213
    %v2215 = vrcp.pop %v2212
    %v2216 = vmul.f32 1.0, %v2215
    %v2217 = vtanh.pop %v2203
    %v2218 = vtanh.pop %v2204
    %v2219 = vmul.f32 %v2214, %v1973
    %v2220 = vmul.f32 %v2216, %v1974
    %2223 = vrot.lane.b32.xlu0 %v2217, 64
    %v2224 = vpop.permute.xlu0 %2223
    %2225 = vrot.lane.b32.xlu0 %v2218, 64
    %v2226 = vpop.permute.xlu0 %2225
    %v2229 = vmul.f32 %v2214, %v2224
    %v2230 = vmul.f32 %v2216, %v2226
    %2233 = vrot.lane.b32.xlu0 %v2229, 32
    %v2234 = vpop.permute.xlu0 %2233
    %2235 = vrot.lane.b32.xlu0 %v2230, 32
    %v2236 = vpop.permute.xlu0 %2235
    %v2239 = vadd.f32 %v2219, %v2234
    %v2240 = vadd.f32 %v2220, %v2236
    %v2241 = vtanh.pop %v2239
    %v2242 = vtanh.pop %v2240
    %2245 = vrot.lane.b32.xlu0 %v2241, 64
    %v2246 = vpop.permute.xlu0 %2245
    %2247 = vrot.lane.b32.xlu0 %v2242, 64
    %v2248 = vpop.permute.xlu0 %2247
    %v2251 = vmul.f32 %v2214, %v2246
    %v2252 = vmul.f32 %v2216, %v2248
    %v2253 = vlaneseq
    %v2254 = vshrl.u32 %v2253, 7
    %v2255 = vsub.s32 3, %v2254
    %v2256 = vrot.slane %v46, %v2255
    %2258 = vrot.lane.b32.xlu0 %v2256, 96
    %v2259 = vpop.permute.xlu0 %2258
    %v2261 = vmul.f32 %v2251, %v2259
    %v2262 = vmul.f32 %v2252, %v2259
    %v2265 = vrot.slane %v2262, 7
    %v2266 = vsel %vm441, %v2265, %v2261
    %2267 = vrot.lane.b32.xlu0 %v2266, 32
    %v2268 = vpop.permute.xlu0 %2267
    %vm2270 = vcmask 254976
    %v2271 = vsel %vm2270, %v2268, 0.0
    %2272 = vadd.xlane.f32.xlu0 %v2271
    %v2273 = vpop.xlane.xlu0 %2272
    %v2276 = vrot.slane %v2176, 7
    %v2277 = vsel %vm441, %v2276, %v2175
    %2278 = vrot.lane.b32.xlu0 %v2277, 127
    %v2279 = vpop.permute.xlu0 %2278
    %v2281 = vadd.f32 %v2273, %v2279
    %s2282 = sld [smem:[#allocation2 + $0x2]]
    %v2283 = vstv %s2282
    %v2284 = vadd.f32 %v2281, %v2283
    %vm2285 = vcmask 1024
    %2286 = vst.msk [vmem:[%s5] sm:$0x3] %vm2285, %v2284
    // Predicated region
    $region26: #{tpu_custom_call.1} parent=1 // pred_check
      _
    $region27: #{tpu_custom_call.1} parent=1 // pred_check_branch
      %2288 = sbr.rel (0) target = $region29
    $region28: #{tpu_custom_call.1} parent=1 // pred_region
      _
    $region29: #{tpu_custom_call.1} parent=1 // pred_fallthru
      _
    // Predicated region
    $region30: #{tpu_custom_call.1} parent=1 // pred_check
      _
    $region31: #{tpu_custom_call.1} parent=1 // pred_check_branch
      %2290 = sbr.rel (0) target = $region33
    $region32: #{tpu_custom_call.1} parent=1 // pred_region
      _
    $region33: #{tpu_custom_call.1} parent=1 // pred_fallthru
      _
    %2291 = vsyncpa [#allocation3], 1

</llo_original>
